<compile_context>
chip_gen: v6e
topology: v6e:2x2x1
jax: 0.10.0
libtpu: 0.0.40
codegen_flags: <defaults>
</compile_context>

<pallas_src>
import functools

import jax
import jax.numpy as jnp
from jax.experimental import pallas as pl
from jax.experimental.pallas import tpu as pltpu


def _bernoulli_encoder_kernel(x_ref, c1_ref, c2_ref, c3_ref, out_ref):
    # x_ref:   (TILE_B, 1)  block of input points (column)
    # c1_ref:  (1, N)       inv_sigmas
    # c2_ref:  (1, N)       2 * cs * inv_sigmas
    # c3_ref:  (1, N)       -cs^2 * inv_sigmas + log(As)
    # out_ref: (TILE_B, N)  Bernoulli logits
    x = x_ref[...]                                            # (TILE_B, 1)
    out = (-(x * x)) * c1_ref[...] + x * c2_ref[...] + c3_ref[...]
    out_ref[...] = out.astype(out_ref.dtype)


@functools.partial(jax.jit, static_argnames=("tile_b",))
def bernoulli_encoder_forward(x, cs, log_sigmas, As, *, tile_b=1024):
    """x: (B, 1) f32; cs/log_sigmas/As: (1, N) f32. Returns logits (B, N) f32."""
    B = x.shape[0]
    N = cs.shape[1]

    # Hoist per-cluster constants out of the kernel (one-time (1, N) XLA ops).
    inv_sigmas = 0.5 * jnp.exp(-2.0 * log_sigmas)             # (1, N)
    c1 = inv_sigmas
    c2 = 2.0 * cs * inv_sigmas
    c3 = -(cs * cs) * inv_sigmas + jnp.log(As)

    num_tiles = pl.cdiv(B, tile_b)   # ragged final block clipped by Pallas

    out = pl.pallas_call(
        _bernoulli_encoder_kernel,
        out_shape=jax.ShapeDtypeStruct((B, N), jnp.float32),
        grid_spec=pl.GridSpec(
            grid=(num_tiles,),
            in_specs=[
                pl.BlockSpec((tile_b, 1), lambda i: (i, 0)),   # x rows
                pl.BlockSpec((1, N), lambda i: (0, 0)),        # inv_sigmas  (resident)
                pl.BlockSpec((1, N), lambda i: (0, 0)),        # 2*cs*inv    (resident)
                pl.BlockSpec((1, N), lambda i: (0, 0)),        # eta3        (resident)
            ],
            out_specs=pl.BlockSpec((tile_b, N), lambda i: (i, 0)),
        ),
        compiler_params=pltpu.CompilerParams(
            dimension_semantics=("parallel",)),
        cost_estimate=pl.CostEstimate(
            flops=5 * B * N,
            transcendentals=0,
            bytes_accessed=4 * (B + 3 * N + B * N)),
    )(x, c1, c2, c3)

    return out


def _init_bernoulli_params(key, N, x_min, x_max):
    # TODO(synk): initialize_bernoulli_params uses sklearn KMeans center init,
    # which has no Pallas/JAX equivalent here; use evenly spaced centers with
    # a small random perturbation instead.
    centers = jnp.linspace(x_min, x_max, N, dtype=jnp.float32).reshape(N, 1)
    centers = centers + 0.01 * jax.random.normal(key, (N, 1), dtype=jnp.float32)
    cs = centers.T                                                    # (1, N)
    log_sigmas = jnp.log(jnp.ones((1, N), jnp.float32) * (x_max - x_min) / N)
    As = jnp.ones((1, N), jnp.float32)
    return cs, log_sigmas, As


def _reference(x, cs, log_sigmas, As):
    # Pure-JAX transcription of the PyTorch forward. The (B,1)@(1,N) matmuls
    # are written as their mathematically identical broadcast form so the
    # reference stays in f32 (TPU `@` defaults to bf16 MXU precision, which
    # is what broke the previous tolerance check).
    inv_sigmas = 0.5 * jnp.exp(-2.0 * log_sigmas)
    etas = (-(x ** 2)) * inv_sigmas
    etas2 = (2.0 * x) * (cs * inv_sigmas)
    etas3 = -(cs ** 2) * inv_sigmas + jnp.log(As)
    return etas + etas2 + etas3


if __name__ == "__main__":
    B, N = 2000, 128          # B deliberately not a tile multiple (ragged last block)
    x_min, x_max = -3.0, 3.0

    key = jax.random.PRNGKey(0)
    k_x, k_p = jax.random.split(key)
    x = jax.random.normal(k_x, (B, 1), dtype=jnp.float32)
    cs, log_sigmas, As = _init_bernoulli_params(k_p, N, x_min, x_max)

    logits = bernoulli_encoder_forward(x, cs, log_sigmas, As, tile_b=1024)
    jax.block_until_ready(logits)

    logits_ref = _reference(x, cs, log_sigmas, As)
    assert logits.shape == (B, N)
    # Logit magnitudes are O(1e3) (inv_sigmas ~ 227), so rtol dominates.
    assert jnp.allclose(logits, logits_ref, rtol=1e-4, atol=1e-3), \
        float(jnp.max(jnp.abs(logits - logits_ref)))

    # TODO(synk): sample() uses torch.distributions Bernoulli sampling; that is
    # host/XLA-side RNG over the returned logits, not a kernel-side op, so it
    # is not implemented here.
    print("KERNEL_OK")
</pallas_src>

<mosaic_0001>
module attributes {stable_mosaic.version = 11 : i64} {
  func.func @_bernoulli_encoder_kernel(%arg0: i32, %arg1: memref<1024x1xf32, #tpu.memory_space<vmem>>, %arg2: memref<1x128xf32, #tpu.memory_space<vmem>>, %arg3: memref<1x128xf32, #tpu.memory_space<vmem>>, %arg4: memref<1x128xf32, #tpu.memory_space<vmem>>, %arg5: memref<1024x128xf32, #tpu.memory_space<vmem>>) attributes {dimension_semantics = [#tpu.dimension_semantics<parallel>], iteration_bounds = array<i64: 2>, scalar_prefetch = 0 : i64, scratch_operands = 0 : i64, tpu.core_type = #tpu.core_type<tc>, window_params = [{transform_indices = @transform_0, window_bounds = array<i64: 1024, 1>}, {pipeline_mode = #tpu.pipeline_mode<synchronous>, transform_indices = @transform_1, window_bounds = array<i64: 1, 128>}, {pipeline_mode = #tpu.pipeline_mode<synchronous>, transform_indices = @transform_2, window_bounds = array<i64: 1, 128>}, {pipeline_mode = #tpu.pipeline_mode<synchronous>, transform_indices = @transform_3, window_bounds = array<i64: 1, 128>}, {transform_indices = @transform_4, window_bounds = array<i64: 1024, 128>}]} {
    %c0 = arith.constant 0 : index
    %c0_0 = arith.constant 0 : index
    %0 = vector.load %arg1[%c0, %c0_0] : memref<1024x1xf32, #tpu.memory_space<vmem>>, vector<1024x1xf32>
    %1 = arith.mulf %0, %0 : vector<1024x1xf32>
    %cst = arith.constant 0.000000e+00 : f32
    %2 = vector.broadcast %cst : f32 to vector<1024x1xf32>
    %3 = arith.subf %2, %1 : vector<1024x1xf32>
    %c0_1 = arith.constant 0 : index
    %c0_2 = arith.constant 0 : index
    %4 = vector.load %arg2[%c0_1, %c0_2] : memref<1x128xf32, #tpu.memory_space<vmem>>, vector<1x128xf32>
    %5 = vector.broadcast %3 : vector<1024x1xf32> to vector<1024x128xf32>
    %6 = vector.broadcast %4 : vector<1x128xf32> to vector<1024x128xf32>
    %7 = arith.mulf %5, %6 : vector<1024x128xf32>
    %c0_3 = arith.constant 0 : index
    %c0_4 = arith.constant 0 : index
    %8 = vector.load %arg3[%c0_3, %c0_4] : memref<1x128xf32, #tpu.memory_space<vmem>>, vector<1x128xf32>
    %9 = vector.broadcast %0 : vector<1024x1xf32> to vector<1024x128xf32>
    %10 = vector.broadcast %8 : vector<1x128xf32> to vector<1024x128xf32>
    %11 = arith.mulf %9, %10 : vector<1024x128xf32>
    %12 = arith.addf %7, %11 : vector<1024x128xf32>
    %c0_5 = arith.constant 0 : index
    %c0_6 = arith.constant 0 : index
    %13 = vector.load %arg4[%c0_5, %c0_6] : memref<1x128xf32, #tpu.memory_space<vmem>>, vector<1x128xf32>
    %14 = vector.broadcast %13 : vector<1x128xf32> to vector<1024x128xf32>
    %15 = arith.addf %12, %14 : vector<1024x128xf32>
    %c0_7 = arith.constant 0 : index
    %c0_8 = arith.constant 0 : index
    %16 = vector.load %arg5[%c0_7, %c0_8] : memref<1024x128xf32, #tpu.memory_space<vmem>>, vector<1024x128xf32>
    tpu.vector_store %arg5[%c0_7, %c0_8], %15 {strides = array<i32>} : memref<1024x128xf32, #tpu.memory_space<vmem>>, vector<1024x128xf32>,
    return
  }
  func.func @transform_0(%arg0: i32) -> (i32, i32) {
    %c0_i32 = arith.constant 0 : i32
    %c0_i32_0 = arith.constant 0 : i32
    return %arg0, %c0_i32 : i32, i32
  }
  func.func @transform_1(%arg0: i32) -> (i32, i32) {
    %c0_i32 = arith.constant 0 : i32
    %c0_i32_0 = arith.constant 0 : i32
    %c0_i32_1 = arith.constant 0 : i32
    return %c0_i32, %c0_i32_0 : i32, i32
  }
  func.func @transform_2(%arg0: i32) -> (i32, i32) {
    %c0_i32 = arith.constant 0 : i32
    %c0_i32_0 = arith.constant 0 : i32
    %c0_i32_1 = arith.constant 0 : i32
    return %c0_i32, %c0_i32_0 : i32, i32
  }
  func.func @transform_3(%arg0: i32) -> (i32, i32) {
    %c0_i32 = arith.constant 0 : i32
    %c0_i32_0 = arith.constant 0 : i32
    %c0_i32_1 = arith.constant 0 : i32
    return %c0_i32, %c0_i32_0 : i32, i32
  }
  func.func @transform_4(%arg0: i32) -> (i32, i32) {
    %c0_i32 = arith.constant 0 : i32
    %c0_i32_0 = arith.constant 0 : i32
    return %arg0, %c0_i32 : i32, i32
  }
}

</mosaic_0001>

<llo_original>
// kernel: bernoulli_encoder_forward.1
$region0: #{bernoulli_encoder_forward.1}
  #allocation0 [shape = 'u32[]', space=smem, size = 0x4, offset = 0x4, fixed_abs, tag = 'smem constant byte address 0x4 - core index']
  #allocation1 [shape = 'u32[144,128]{1,0:T(1,128)}', space=vmem, size = 0x12000, scoped, tag = 'internal scratch']
  %s0 = inlined_call_operand.vmem [shape: f32[2000,1], index: 0, kind: input, shape index: {}]
  %s1 = inlined_call_operand.vmem [shape: f32[1,128], index: 1, kind: input, shape index: {}]
  %s2 = inlined_call_operand.vmem [shape: f32[1,128], index: 2, kind: input, shape index: {}]
  %s3 = inlined_call_operand.vmem [shape: f32[1,128], index: 3, kind: input, shape index: {}]
  %s4 = inlined_call_operand.hbm [shape: f32[2000,128], index: 4, kind: output, shape index: {}]
  %s5 = sld [smem:[#allocation0]]
  $region49: #{bernoulli_encoder_forward.1} parent=0
    _
  %s7 = ssub.s32 1, %s5
  %s8 = scalar_select 0, %s7, %s5
  $region1: #{bernoulli_encoder_forward.1} parent=0
    #allocation2 [shape = 'u8[1048576]{0}', space=vmem, size = 0x100000, scoped, tag = 'output window, operand 0']
    #allocation3 [shape = 's32[2]{0}', space=sflag, size = 0x8, scoped, tag = 'scoped memory for bernoulli_encoder_forward.1']
    %9 = vsyncpa [#allocation3], 0
    %s10 = scalar_lea.sflag [#allocation3], 1
    %11 = vsyncpa %s10, 0
    loop: start=0, step=1, limit=4
    $region2: #{bernoulli_encoder_forward.1} parent=1 // loop_pre_header
      _
    $region3: #{bernoulli_encoder_forward.1} parent=1 // loop_header
      %s13 = sphi 0, %s17
      %p14 = scmp.ge.s32.totalorder %s13, 4
      %s23 = sphi 0, %s25
      %s26 = sphi 0, %s23
      %s27 = sphi 0, %s26
      %s43 = sphi 0, %s27
      %s47 = sphi 0, %s47
      %s49 = sphi 0, %s47
      %s50 = sphi 0, %s49
      %s64 = sphi 0, %s50
      %s68 = sphi 0, %s68
      %s70 = sphi 0, %s68
      %s71 = sphi 0, %s70
      %s85 = sphi 0, %s71
      %s89 = sphi 0, %s89
      %s91 = sphi 0, %s89
      %s92 = sphi 0, %s91
      %s106 = sphi 0, %s92
      %s112 = sphi 0, %s114
      %s115 = sphi 0, %s112
      %s116 = sphi 0, %s115
      %s132 = sphi 0, %s116
    $region4: #{bernoulli_encoder_forward.1} parent=1 // loop_header_branch
      %16 = sbr.rel (%p14) target = $region8
    $region5: #{bernoulli_encoder_forward.1} parent=1 // loop_body
      %s18 = ssub.s32 %s13, 1
      %s19 = ssub.s32 %s13, 2
      %s20 = sadd.s32 %s13, 1
      %s21 = ssub.s32 %s13, %s20
      %p22 = scmp.eq.s32.totalorder %s21, 0
      %s24 = sadd.s32 %s23, 1
      %s25 = scalar_select %p22, %s23, %s24
      %p28 = pneg %p22
      %p29 = scmp.eq.s32.totalorder %s13, 1
      %p30 = por %p28, %p29
      %p31 = scmp.ne.s32.totalorder %s23, %s26
      %p32 = scmp.eq.s32.totalorder %s13, 0
      %p33 = por %p31, %p32
      %p34 = scmp.ne.s32.totalorder %s23, %s26
      %p35 = scmp.eq.s32.totalorder %s18, 1
      %p36 = por %p34, %p35
      %p37 = scmp.ne.s32.totalorder %s26, %s27
      %p38 = scmp.eq.s32.totalorder %s18, 0
      %p39 = por %p37, %p38
      %p40 = scmp.ne.s32.totalorder %s26, %s27
      %p41 = scmp.eq.s32.totalorder %s19, 1
      %p42 = por %p40, %p41
      %p44 = scmp.ne.s32.totalorder %s27, %s43
      %p45 = scmp.eq.s32.totalorder %s19, 0
      %p46 = por %p44, %p45
      %s48 = sadd.s32 %s47, 1
      %p51 = scmp.eq.s32.totalorder %s13, 1
      %p52 = scmp.ne.s32.totalorder %s47, %s49
      %p53 = scmp.eq.s32.totalorder %s13, 0
      %p54 = por %p52, %p53
      %p55 = scmp.ne.s32.totalorder %s47, %s49
      %p56 = scmp.eq.s32.totalorder %s18, 1
      %p57 = por %p55, %p56
      %p58 = scmp.ne.s32.totalorder %s49, %s50
      %p59 = scmp.eq.s32.totalorder %s18, 0
      %p60 = por %p58, %p59
      %p61 = scmp.ne.s32.totalorder %s49, %s50
      %p62 = scmp.eq.s32.totalorder %s19, 1
      %p63 = por %p61, %p62
      %p65 = scmp.ne.s32.totalorder %s50, %s64
      %p66 = scmp.eq.s32.totalorder %s19, 0
      %p67 = por %p65, %p66
      %s69 = sadd.s32 %s68, 1
      %p72 = scmp.eq.s32.totalorder %s13, 1
      %p73 = scmp.ne.s32.totalorder %s68, %s70
      %p74 = scmp.eq.s32.totalorder %s13, 0
      %p75 = por %p73, %p74
      %p76 = scmp.ne.s32.totalorder %s68, %s70
      %p77 = scmp.eq.s32.totalorder %s18, 1
      %p78 = por %p76, %p77
      %p79 = scmp.ne.s32.totalorder %s70, %s71
      %p80 = scmp.eq.s32.totalorder %s18, 0
      %p81 = por %p79, %p80
      %p82 = scmp.ne.s32.totalorder %s70, %s71
      %p83 = scmp.eq.s32.totalorder %s19, 1
      %p84 = por %p82, %p83
      %p86 = scmp.ne.s32.totalorder %s71, %s85
      %p87 = scmp.eq.s32.totalorder %s19, 0
      %p88 = por %p86, %p87
      %s90 = sadd.s32 %s89, 1
      %p93 = scmp.eq.s32.totalorder %s13, 1
      %p94 = scmp.ne.s32.totalorder %s89, %s91
      %p95 = scmp.eq.s32.totalorder %s13, 0
      %p96 = por %p94, %p95
      %p97 = scmp.ne.s32.totalorder %s89, %s91
      %p98 = scmp.eq.s32.totalorder %s18, 1
      %p99 = por %p97, %p98
      %p100 = scmp.ne.s32.totalorder %s91, %s92
      %p101 = scmp.eq.s32.totalorder %s18, 0
      %p102 = por %p100, %p101
      %p103 = scmp.ne.s32.totalorder %s91, %s92
      %p104 = scmp.eq.s32.totalorder %s19, 1
      %p105 = por %p103, %p104
      %p107 = scmp.ne.s32.totalorder %s92, %s106
      %p108 = scmp.eq.s32.totalorder %s19, 0
      %p109 = por %p107, %p108
      %s110 = ssub.s32 %s13, %s20
      %p111 = scmp.eq.s32.totalorder %s110, 0
      %s113 = sadd.s32 %s112, 1
      %s114 = scalar_select %p111, %s112, %s113
      %p117 = pneg %p111
      %p118 = scmp.eq.s32.totalorder %s13, 1
      %p119 = por %p117, %p118
      %p120 = scmp.ne.s32.totalorder %s112, %s115
      %p121 = scmp.eq.s32.totalorder %s13, 0
      %p122 = por %p120, %p121
      %p123 = scmp.ne.s32.totalorder %s112, %s115
      %p124 = scmp.eq.s32.totalorder %s18, 1
      %p125 = por %p123, %p124
      %p126 = scmp.ne.s32.totalorder %s115, %s116
      %p127 = scmp.eq.s32.totalorder %s18, 0
      %p128 = por %p126, %p127
      %p129 = scmp.ne.s32.totalorder %s115, %s116
      %p130 = scmp.eq.s32.totalorder %s19, 1
      %p131 = por %p129, %p130
      %p133 = scmp.ne.s32.totalorder %s116, %s132
      %p134 = scmp.eq.s32.totalorder %s19, 0
      %p135 = por %p133, %p134
      %p136 = scmp.le.s32.totalorder 1, %s13
      %p137 = scmp.lt.s32.totalorder %s13, 3
      %p138 = pnand %p136, %p137
      %p139 = pneg %p138
      // Predicated region
      $region9: #{bernoulli_encoder_forward.1} parent=5 // pred_check
        _
      $region10: #{bernoulli_encoder_forward.1} parent=5 // pred_check_branch
        %141 = sbr.rel (%p138) target = $region12
      $region11: #{bernoulli_encoder_forward.1} parent=5 // pred_region
        %s142 = ssub.s32 %s13, 1
        // Predicated region
        $region13: #{bernoulli_encoder_forward.1} parent=11 // pred_check
          %p143 = pneg %p60
        $region14: #{bernoulli_encoder_forward.1} parent=11 // pred_check_branch
          %145 = sbr.rel (%p143) target = $region16
        $region15: #{bernoulli_encoder_forward.1} parent=11 // pred_region
          _
        $region16: #{bernoulli_encoder_forward.1} parent=11 // pred_fallthru
          _
        // Predicated region
        $region17: #{bernoulli_encoder_forward.1} parent=11 // pred_check
          %p146 = pneg %p81
        $region18: #{bernoulli_encoder_forward.1} parent=11 // pred_check_branch
          %148 = sbr.rel (%p146) target = $region20
        $region19: #{bernoulli_encoder_forward.1} parent=11 // pred_region
          _
        $region20: #{bernoulli_encoder_forward.1} parent=11 // pred_fallthru
          _
        // Predicated region
        $region21: #{bernoulli_encoder_forward.1} parent=11 // pred_check
          %p149 = pneg %p102
        $region22: #{bernoulli_encoder_forward.1} parent=11 // pred_check_branch
          %151 = sbr.rel (%p149) target = $region24
        $region23: #{bernoulli_encoder_forward.1} parent=11 // pred_region
          _
        $region24: #{bernoulli_encoder_forward.1} parent=11 // pred_fallthru
          _
      $region12: #{bernoulli_encoder_forward.1} parent=5 // pred_fallthru
        _
      %p152 = scmp.lt.s32.totalorder %s13, 2
      // Predicated region
      $region25: #{bernoulli_encoder_forward.1} parent=5 // pred_check
        %p153 = pneg %p152
      $region26: #{bernoulli_encoder_forward.1} parent=5 // pred_check_branch
        %155 = sbr.rel (%p153) target = $region28
      $region27: #{bernoulli_encoder_forward.1} parent=5 // pred_region
        // Predicated region
        $region29: #{bernoulli_encoder_forward.1} parent=27 // pred_check
          %p156 = pneg %p33
        $region30: #{bernoulli_encoder_forward.1} parent=27 // pred_check_branch
          %158 = sbr.rel (%p156) target = $region32
        $region31: #{bernoulli_encoder_forward.1} parent=27 // pred_region
          %s159 = smul.u32 128, %s13
          %s160 = ssub.s32 250, %s159
          %p161 = scmp.lt.s32.totalorder %s160, 128
          %s162 = scalar_select %p161, %s160, 128
          %s163 = smul.u32 128, %s162
          %p164 = scmp.lt.s32.totalorder %s159, 249
          %s165 = scalar_select %p164, %s159, 249
          %s166 = smul.addr %s165, 8
          %s167 = scalar_lea.vmem %s0, %s166
          %s168 = smul.u32 128, %s13
          %s169 = ssub.s32 250, %s168
          %p170 = scmp.lt.s32.totalorder %s169, 128
          %s171 = scalar_select %p170, %s169, 128
          %s172 = smul.u32 128, %s171
        $region32: #{bernoulli_encoder_forward.1} parent=27 // pred_fallthru
          _
      $region28: #{bernoulli_encoder_forward.1} parent=5 // pred_fallthru
        _
      %p173 = scmp.le.s32.totalorder 1, %s13
      %p174 = scmp.lt.s32.totalorder %s13, 3
      %p175 = pnand %p173, %p174
      %p176 = pneg %p175
      // Predicated region
      $region33: #{bernoulli_encoder_forward.1} parent=5 // pred_check
        _
      $region34: #{bernoulli_encoder_forward.1} parent=5 // pred_check_branch
        %178 = sbr.rel (%p175) target = $region36
      $region35: #{bernoulli_encoder_forward.1} parent=5 // pred_region
        %s179 = ssub.s32 %s13, 1
        %s180 = smul.u32 128, %s18
        %s181 = ssub.s32 250, %s180
        %p182 = scmp.lt.s32.totalorder %s181, 128
        %s183 = scalar_select %p182, %s181, 128
        %s184 = smul.u32 128, %s183
        %p185 = scmp.lt.s32.totalorder %s180, 249
        %s186 = scalar_select %p185, %s180, 249
        %s187 = smul.addr %s186, 8
        %s188 = scalar_lea.vmem %s0, %s187
        %p189 = pneg %p39
        %p190 = pneg %p36
        %p191 = pneg %p60
        %p192 = pneg %p57
        %p193 = pneg %p81
        %p194 = pneg %p78
        %p195 = pneg %p102
        %p196 = pneg %p99
        %p197 = pneg %p128
        %p198 = pneg %p125
        %s199 = sand.u32 %s115, 1
        %s200 = scalar_lea.sflag [#allocation3], %s199
        %s201 = sand.u32 %s115, 1
        %s202 = smul.addr %s201, 1024
        %s203 = scalar_lea.vmem [#allocation2], %s202
        %s204 = smul.u32 128, %s18
        %s205 = ssub.s32 250, %s204
        %p206 = scmp.lt.s32.totalorder %s205, 128
        %s207 = scalar_select %p206, %s205, 128
        %s208 = smul.u32 128, %s207
        %p209 = scmp.lt.s32.totalorder %s204, 249
        %s210 = scalar_select %p209, %s204, 249
        %s211 = smul.addr %s210, 8
        %s212 = scalar_lea.vmem %s0, %s211
        %s213 = smul.u32 128, %s18
        %s214 = ssub.s32 250, %s213
        %p215 = scmp.lt.s32.totalorder %s214, 128
        %s216 = scalar_select %p215, %s214, 128
        %s217 = smul.u32 128, %s216
        %s218 = smul.u32 128, %s18
        %s219 = ssub.s32 250, %s218
        %p220 = scmp.lt.s32.totalorder %s219, 128
        %s221 = scalar_select %p220, %s219, 128
        %s222 = smul.u32 128, %s221
        %v223 = vld [vmem:[%s212] sm:$0xff]
        %v224 = vld [vmem:[%s212 + $0x8] sm:$0xff]
        %v225 = vld [vmem:[%s212 + $0x10] sm:$0xff]
        %v226 = vld [vmem:[%s212 + $0x18] sm:$0xff]
        %v227 = vld [vmem:[%s212 + $0x20] sm:$0xff]
        %v228 = vld [vmem:[%s212 + $0x28] sm:$0xff]
        %v229 = vld [vmem:[%s212 + $0x30] sm:$0xff]
        %v230 = vld [vmem:[%s212 + $0x38] sm:$0xff]
        %v231 = vld [vmem:[%s212 + $0x40] sm:$0xff]
        %v232 = vld [vmem:[%s212 + $0x48] sm:$0xff]
        %v233 = vld [vmem:[%s212 + $0x50] sm:$0xff]
        %v234 = vld [vmem:[%s212 + $0x58] sm:$0xff]
        %v235 = vld [vmem:[%s212 + $0x60] sm:$0xff]
        %v236 = vld [vmem:[%s212 + $0x68] sm:$0xff]
        %v237 = vld [vmem:[%s212 + $0x70] sm:$0xff]
        %v238 = vld [vmem:[%s212 + $0x78] sm:$0xff]
        %v239 = vld [vmem:[%s212 + $0x80] sm:$0xff]
        %v240 = vld [vmem:[%s212 + $0x88] sm:$0xff]
        %v241 = vld [vmem:[%s212 + $0x90] sm:$0xff]
        %v242 = vld [vmem:[%s212 + $0x98] sm:$0xff]
        %v243 = vld [vmem:[%s212 + $0xa0] sm:$0xff]
        %v244 = vld [vmem:[%s212 + $0xa8] sm:$0xff]
        %v245 = vld [vmem:[%s212 + $0xb0] sm:$0xff]
        %v246 = vld [vmem:[%s212 + $0xb8] sm:$0xff]
        %v247 = vld [vmem:[%s212 + $0xc0] sm:$0xff]
        %v248 = vld [vmem:[%s212 + $0xc8] sm:$0xff]
        %v249 = vld [vmem:[%s212 + $0xd0] sm:$0xff]
        %v250 = vld [vmem:[%s212 + $0xd8] sm:$0xff]
        %v251 = vld [vmem:[%s212 + $0xe0] sm:$0xff]
        %v252 = vld [vmem:[%s212 + $0xe8] sm:$0xff]
        %v253 = vld [vmem:[%s212 + $0xf0] sm:$0xff]
        %v254 = vld [vmem:[%s212 + $0xf8] sm:$0xff]
        %v255 = vld [vmem:[%s212 + $0x100] sm:$0xff]
        %v256 = vld [vmem:[%s212 + $0x108] sm:$0xff]
        %v257 = vld [vmem:[%s212 + $0x110] sm:$0xff]
        %v258 = vld [vmem:[%s212 + $0x118] sm:$0xff]
        %v259 = vld [vmem:[%s212 + $0x120] sm:$0xff]
        %v260 = vld [vmem:[%s212 + $0x128] sm:$0xff]
        %v261 = vld [vmem:[%s212 + $0x130] sm:$0xff]
        %v262 = vld [vmem:[%s212 + $0x138] sm:$0xff]
        %v263 = vld [vmem:[%s212 + $0x140] sm:$0xff]
        %v264 = vld [vmem:[%s212 + $0x148] sm:$0xff]
        %v265 = vld [vmem:[%s212 + $0x150] sm:$0xff]
        %v266 = vld [vmem:[%s212 + $0x158] sm:$0xff]
        %v267 = vld [vmem:[%s212 + $0x160] sm:$0xff]
        %v268 = vld [vmem:[%s212 + $0x168] sm:$0xff]
        %v269 = vld [vmem:[%s212 + $0x170] sm:$0xff]
        %v270 = vld [vmem:[%s212 + $0x178] sm:$0xff]
        %v271 = vld [vmem:[%s212 + $0x180] sm:$0xff]
        %v272 = vld [vmem:[%s212 + $0x188] sm:$0xff]
        %v273 = vld [vmem:[%s212 + $0x190] sm:$0xff]
        %v274 = vld [vmem:[%s212 + $0x198] sm:$0xff]
        %v275 = vld [vmem:[%s212 + $0x1a0] sm:$0xff]
        %v276 = vld [vmem:[%s212 + $0x1a8] sm:$0xff]
        %v277 = vld [vmem:[%s212 + $0x1b0] sm:$0xff]
        %v278 = vld [vmem:[%s212 + $0x1b8] sm:$0xff]
        %v279 = vld [vmem:[%s212 + $0x1c0] sm:$0xff]
        %v280 = vld [vmem:[%s212 + $0x1c8] sm:$0xff]
        %v281 = vld [vmem:[%s212 + $0x1d0] sm:$0xff]
        %v282 = vld [vmem:[%s212 + $0x1d8] sm:$0xff]
        %v283 = vld [vmem:[%s212 + $0x1e0] sm:$0xff]
        %v284 = vld [vmem:[%s212 + $0x1e8] sm:$0xff]
        %v285 = vld [vmem:[%s212 + $0x1f0] sm:$0xff]
        %v286 = vld [vmem:[%s212 + $0x1f8] sm:$0xff]
        %v287 = vld [vmem:[%s212 + $0x200] sm:$0xff]
        %v288 = vld [vmem:[%s212 + $0x208] sm:$0xff]
        %v289 = vld [vmem:[%s212 + $0x210] sm:$0xff]
        %v290 = vld [vmem:[%s212 + $0x218] sm:$0xff]
        %v291 = vld [vmem:[%s212 + $0x220] sm:$0xff]
        %v292 = vld [vmem:[%s212 + $0x228] sm:$0xff]
        %v293 = vld [vmem:[%s212 + $0x230] sm:$0xff]
        %v294 = vld [vmem:[%s212 + $0x238] sm:$0xff]
        %v295 = vld [vmem:[%s212 + $0x240] sm:$0xff]
        %v296 = vld [vmem:[%s212 + $0x248] sm:$0xff]
        %v297 = vld [vmem:[%s212 + $0x250] sm:$0xff]
        %v298 = vld [vmem:[%s212 + $0x258] sm:$0xff]
        %v299 = vld [vmem:[%s212 + $0x260] sm:$0xff]
        %v300 = vld [vmem:[%s212 + $0x268] sm:$0xff]
        %v301 = vld [vmem:[%s212 + $0x270] sm:$0xff]
        %v302 = vld [vmem:[%s212 + $0x278] sm:$0xff]
        %v303 = vld [vmem:[%s212 + $0x280] sm:$0xff]
        %v304 = vld [vmem:[%s212 + $0x288] sm:$0xff]
        %v305 = vld [vmem:[%s212 + $0x290] sm:$0xff]
        %v306 = vld [vmem:[%s212 + $0x298] sm:$0xff]
        %v307 = vld [vmem:[%s212 + $0x2a0] sm:$0xff]
        %v308 = vld [vmem:[%s212 + $0x2a8] sm:$0xff]
        %v309 = vld [vmem:[%s212 + $0x2b0] sm:$0xff]
        %v310 = vld [vmem:[%s212 + $0x2b8] sm:$0xff]
        %v311 = vld [vmem:[%s212 + $0x2c0] sm:$0xff]
        %v312 = vld [vmem:[%s212 + $0x2c8] sm:$0xff]
        %v313 = vld [vmem:[%s212 + $0x2d0] sm:$0xff]
        %v314 = vld [vmem:[%s212 + $0x2d8] sm:$0xff]
        %v315 = vld [vmem:[%s212 + $0x2e0] sm:$0xff]
        %v316 = vld [vmem:[%s212 + $0x2e8] sm:$0xff]
        %v317 = vld [vmem:[%s212 + $0x2f0] sm:$0xff]
        %v318 = vld [vmem:[%s212 + $0x2f8] sm:$0xff]
        %v319 = vld [vmem:[%s212 + $0x300] sm:$0xff]
        %v320 = vld [vmem:[%s212 + $0x308] sm:$0xff]
        %v321 = vld [vmem:[%s212 + $0x310] sm:$0xff]
        %v322 = vld [vmem:[%s212 + $0x318] sm:$0xff]
        %v323 = vld [vmem:[%s212 + $0x320] sm:$0xff]
        %v324 = vld [vmem:[%s212 + $0x328] sm:$0xff]
        %v325 = vld [vmem:[%s212 + $0x330] sm:$0xff]
        %v326 = vld [vmem:[%s212 + $0x338] sm:$0xff]
        %v327 = vld [vmem:[%s212 + $0x340] sm:$0xff]
        %v328 = vld [vmem:[%s212 + $0x348] sm:$0xff]
        %v329 = vld [vmem:[%s212 + $0x350] sm:$0xff]
        %v330 = vld [vmem:[%s212 + $0x358] sm:$0xff]
        %v331 = vld [vmem:[%s212 + $0x360] sm:$0xff]
        %v332 = vld [vmem:[%s212 + $0x368] sm:$0xff]
        %v333 = vld [vmem:[%s212 + $0x370] sm:$0xff]
        %v334 = vld [vmem:[%s212 + $0x378] sm:$0xff]
        %v335 = vld [vmem:[%s212 + $0x380] sm:$0xff]
        %v336 = vld [vmem:[%s212 + $0x388] sm:$0xff]
        %v337 = vld [vmem:[%s212 + $0x390] sm:$0xff]
        %v338 = vld [vmem:[%s212 + $0x398] sm:$0xff]
        %v339 = vld [vmem:[%s212 + $0x3a0] sm:$0xff]
        %v340 = vld [vmem:[%s212 + $0x3a8] sm:$0xff]
        %v341 = vld [vmem:[%s212 + $0x3b0] sm:$0xff]
        %v342 = vld [vmem:[%s212 + $0x3b8] sm:$0xff]
        %v343 = vld [vmem:[%s212 + $0x3c0] sm:$0xff]
        %v344 = vld [vmem:[%s212 + $0x3c8] sm:$0xff]
        %v345 = vld [vmem:[%s212 + $0x3d0] sm:$0xff]
        %v346 = vld [vmem:[%s212 + $0x3d8] sm:$0xff]
        %v347 = vld [vmem:[%s212 + $0x3e0] sm:$0xff]
        %v348 = vld [vmem:[%s212 + $0x3e8] sm:$0xff]
        %v349 = vld [vmem:[%s212 + $0x3f0] sm:$0xff]
        %v350 = vld [vmem:[%s212 + $0x3f8] sm:$0xff]
        %v351 = vmul.f32 %v223, %v223
        %v352 = vmul.f32 %v224, %v224
        %v353 = vmul.f32 %v225, %v225
        %v354 = vmul.f32 %v226, %v226
        %v355 = vmul.f32 %v227, %v227
        %v356 = vmul.f32 %v228, %v228
        %v357 = vmul.f32 %v229, %v229
        %v358 = vmul.f32 %v230, %v230
        %v359 = vmul.f32 %v231, %v231
        %v360 = vmul.f32 %v232, %v232
        %v361 = vmul.f32 %v233, %v233
        %v362 = vmul.f32 %v234, %v234
        %v363 = vmul.f32 %v235, %v235
        %v364 = vmul.f32 %v236, %v236
        %v365 = vmul.f32 %v237, %v237
        %v366 = vmul.f32 %v238, %v238
        %v367 = vmul.f32 %v239, %v239
        %v368 = vmul.f32 %v240, %v240
        %v369 = vmul.f32 %v241, %v241
        %v370 = vmul.f32 %v242, %v242
        %v371 = vmul.f32 %v243, %v243
        %v372 = vmul.f32 %v244, %v244
        %v373 = vmul.f32 %v245, %v245
        %v374 = vmul.f32 %v246, %v246
        %v375 = vmul.f32 %v247, %v247
        %v376 = vmul.f32 %v248, %v248
        %v377 = vmul.f32 %v249, %v249
        %v378 = vmul.f32 %v250, %v250
        %v379 = vmul.f32 %v251, %v251
        %v380 = vmul.f32 %v252, %v252
        %v381 = vmul.f32 %v253, %v253
        %v382 = vmul.f32 %v254, %v254
        %v383 = vmul.f32 %v255, %v255
        %v384 = vmul.f32 %v256, %v256
        %v385 = vmul.f32 %v257, %v257
        %v386 = vmul.f32 %v258, %v258
        %v387 = vmul.f32 %v259, %v259
        %v388 = vmul.f32 %v260, %v260
        %v389 = vmul.f32 %v261, %v261
        %v390 = vmul.f32 %v262, %v262
        %v391 = vmul.f32 %v263, %v263
        %v392 = vmul.f32 %v264, %v264
        %v393 = vmul.f32 %v265, %v265
        %v394 = vmul.f32 %v266, %v266
        %v395 = vmul.f32 %v267, %v267
        %v396 = vmul.f32 %v268, %v268
        %v397 = vmul.f32 %v269, %v269
        %v398 = vmul.f32 %v270, %v270
        %v399 = vmul.f32 %v271, %v271
        %v400 = vmul.f32 %v272, %v272
        %v401 = vmul.f32 %v273, %v273
        %v402 = vmul.f32 %v274, %v274
        %v403 = vmul.f32 %v275, %v275
        %v404 = vmul.f32 %v276, %v276
        %v405 = vmul.f32 %v277, %v277
        %v406 = vmul.f32 %v278, %v278
        %v407 = vmul.f32 %v279, %v279
        %v408 = vmul.f32 %v280, %v280
        %v409 = vmul.f32 %v281, %v281
        %v410 = vmul.f32 %v282, %v282
        %v411 = vmul.f32 %v283, %v283
        %v412 = vmul.f32 %v284, %v284
        %v413 = vmul.f32 %v285, %v285
        %v414 = vmul.f32 %v286, %v286
        %v415 = vmul.f32 %v287, %v287
        %v416 = vmul.f32 %v288, %v288
        %v417 = vmul.f32 %v289, %v289
        %v418 = vmul.f32 %v290, %v290
        %v419 = vmul.f32 %v291, %v291
        %v420 = vmul.f32 %v292, %v292
        %v421 = vmul.f32 %v293, %v293
        %v422 = vmul.f32 %v294, %v294
        %v423 = vmul.f32 %v295, %v295
        %v424 = vmul.f32 %v296, %v296
        %v425 = vmul.f32 %v297, %v297
        %v426 = vmul.f32 %v298, %v298
        %v427 = vmul.f32 %v299, %v299
        %v428 = vmul.f32 %v300, %v300
        %v429 = vmul.f32 %v301, %v301
        %v430 = vmul.f32 %v302, %v302
        %v431 = vmul.f32 %v303, %v303
        %v432 = vmul.f32 %v304, %v304
        %v433 = vmul.f32 %v305, %v305
        %v434 = vmul.f32 %v306, %v306
        %v435 = vmul.f32 %v307, %v307
        %v436 = vmul.f32 %v308, %v308
        %v437 = vmul.f32 %v309, %v309
        %v438 = vmul.f32 %v310, %v310
        %v439 = vmul.f32 %v311, %v311
        %v440 = vmul.f32 %v312, %v312
        %v441 = vmul.f32 %v313, %v313
        %v442 = vmul.f32 %v314, %v314
        %v443 = vmul.f32 %v315, %v315
        %v444 = vmul.f32 %v316, %v316
        %v445 = vmul.f32 %v317, %v317
        %v446 = vmul.f32 %v318, %v318
        %v447 = vmul.f32 %v319, %v319
        %v448 = vmul.f32 %v320, %v320
        %v449 = vmul.f32 %v321, %v321
        %v450 = vmul.f32 %v322, %v322
        %v451 = vmul.f32 %v323, %v323
        %v452 = vmul.f32 %v324, %v324
        %v453 = vmul.f32 %v325, %v325
        %v454 = vmul.f32 %v326, %v326
        %v455 = vmul.f32 %v327, %v327
        %v456 = vmul.f32 %v328, %v328
        %v457 = vmul.f32 %v329, %v329
        %v458 = vmul.f32 %v330, %v330
        %v459 = vmul.f32 %v331, %v331
        %v460 = vmul.f32 %v332, %v332
        %v461 = vmul.f32 %v333, %v333
        %v462 = vmul.f32 %v334, %v334
        %v463 = vmul.f32 %v335, %v335
        %v464 = vmul.f32 %v336, %v336
        %v465 = vmul.f32 %v337, %v337
        %v466 = vmul.f32 %v338, %v338
        %v467 = vmul.f32 %v339, %v339
        %v468 = vmul.f32 %v340, %v340
        %v469 = vmul.f32 %v341, %v341
        %v470 = vmul.f32 %v342, %v342
        %v471 = vmul.f32 %v343, %v343
        %v472 = vmul.f32 %v344, %v344
        %v473 = vmul.f32 %v345, %v345
        %v474 = vmul.f32 %v346, %v346
        %v475 = vmul.f32 %v347, %v347
        %v476 = vmul.f32 %v348, %v348
        %v477 = vmul.f32 %v349, %v349
        %v478 = vmul.f32 %v350, %v350
        %v479 = vsub.f32 0.0, %v351
        %v480 = vsub.f32 0.0, %v352
        %v481 = vsub.f32 0.0, %v353
        %v482 = vsub.f32 0.0, %v354
        %v483 = vsub.f32 0.0, %v355
        %v484 = vsub.f32 0.0, %v356
        %v485 = vsub.f32 0.0, %v357
        %v486 = vsub.f32 0.0, %v358
        %v487 = vsub.f32 0.0, %v359
        %v488 = vsub.f32 0.0, %v360
        %v489 = vsub.f32 0.0, %v361
        %v490 = vsub.f32 0.0, %v362
        %v491 = vsub.f32 0.0, %v363
        %v492 = vsub.f32 0.0, %v364
        %v493 = vsub.f32 0.0, %v365
        %v494 = vsub.f32 0.0, %v366
        %v495 = vsub.f32 0.0, %v367
        %v496 = vsub.f32 0.0, %v368
        %v497 = vsub.f32 0.0, %v369
        %v498 = vsub.f32 0.0, %v370
        %v499 = vsub.f32 0.0, %v371
        %v500 = vsub.f32 0.0, %v372
        %v501 = vsub.f32 0.0, %v373
        %v502 = vsub.f32 0.0, %v374
        %v503 = vsub.f32 0.0, %v375
        %v504 = vsub.f32 0.0, %v376
        %v505 = vsub.f32 0.0, %v377
        %v506 = vsub.f32 0.0, %v378
        %v507 = vsub.f32 0.0, %v379
        %v508 = vsub.f32 0.0, %v380
        %v509 = vsub.f32 0.0, %v381
        %v510 = vsub.f32 0.0, %v382
        %v511 = vsub.f32 0.0, %v383
        %v512 = vsub.f32 0.0, %v384
        %v513 = vsub.f32 0.0, %v385
        %v514 = vsub.f32 0.0, %v386
        %v515 = vsub.f32 0.0, %v387
        %v516 = vsub.f32 0.0, %v388
        %v517 = vsub.f32 0.0, %v389
        %v518 = vsub.f32 0.0, %v390
        %v519 = vsub.f32 0.0, %v391
        %v520 = vsub.f32 0.0, %v392
        %v521 = vsub.f32 0.0, %v393
        %v522 = vsub.f32 0.0, %v394
        %v523 = vsub.f32 0.0, %v395
        %v524 = vsub.f32 0.0, %v396
        %v525 = vsub.f32 0.0, %v397
        %v526 = vsub.f32 0.0, %v398
        %v527 = vsub.f32 0.0, %v399
        %v528 = vsub.f32 0.0, %v400
        %v529 = vsub.f32 0.0, %v401
        %v530 = vsub.f32 0.0, %v402
        %v531 = vsub.f32 0.0, %v403
        %v532 = vsub.f32 0.0, %v404
        %v533 = vsub.f32 0.0, %v405
        %v534 = vsub.f32 0.0, %v406
        %v535 = vsub.f32 0.0, %v407
        %v536 = vsub.f32 0.0, %v408
        %v537 = vsub.f32 0.0, %v409
        %v538 = vsub.f32 0.0, %v410
        %v539 = vsub.f32 0.0, %v411
        %v540 = vsub.f32 0.0, %v412
        %v541 = vsub.f32 0.0, %v413
        %v542 = vsub.f32 0.0, %v414
        %v543 = vsub.f32 0.0, %v415
        %v544 = vsub.f32 0.0, %v416
        %v545 = vsub.f32 0.0, %v417
        %v546 = vsub.f32 0.0, %v418
        %v547 = vsub.f32 0.0, %v419
        %v548 = vsub.f32 0.0, %v420
        %v549 = vsub.f32 0.0, %v421
        %v550 = vsub.f32 0.0, %v422
        %v551 = vsub.f32 0.0, %v423
        %v552 = vsub.f32 0.0, %v424
        %v553 = vsub.f32 0.0, %v425
        %v554 = vsub.f32 0.0, %v426
        %v555 = vsub.f32 0.0, %v427
        %v556 = vsub.f32 0.0, %v428
        %v557 = vsub.f32 0.0, %v429
        %v558 = vsub.f32 0.0, %v430
        %v559 = vsub.f32 0.0, %v431
        %v560 = vsub.f32 0.0, %v432
        %v561 = vsub.f32 0.0, %v433
        %v562 = vsub.f32 0.0, %v434
        %v563 = vsub.f32 0.0, %v435
        %v564 = vsub.f32 0.0, %v436
        %v565 = vsub.f32 0.0, %v437
        %v566 = vsub.f32 0.0, %v438
        %v567 = vsub.f32 0.0, %v439
        %v568 = vsub.f32 0.0, %v440
        %v569 = vsub.f32 0.0, %v441
        %v570 = vsub.f32 0.0, %v442
        %v571 = vsub.f32 0.0, %v443
        %v572 = vsub.f32 0.0, %v444
        %v573 = vsub.f32 0.0, %v445
        %v574 = vsub.f32 0.0, %v446
        %v575 = vsub.f32 0.0, %v447
        %v576 = vsub.f32 0.0, %v448
        %v577 = vsub.f32 0.0, %v449
        %v578 = vsub.f32 0.0, %v450
        %v579 = vsub.f32 0.0, %v451
        %v580 = vsub.f32 0.0, %v452
        %v581 = vsub.f32 0.0, %v453
        %v582 = vsub.f32 0.0, %v454
        %v583 = vsub.f32 0.0, %v455
        %v584 = vsub.f32 0.0, %v456
        %v585 = vsub.f32 0.0, %v457
        %v586 = vsub.f32 0.0, %v458
        %v587 = vsub.f32 0.0, %v459
        %v588 = vsub.f32 0.0, %v460
        %v589 = vsub.f32 0.0, %v461
        %v590 = vsub.f32 0.0, %v462
        %v591 = vsub.f32 0.0, %v463
        %v592 = vsub.f32 0.0, %v464
        %v593 = vsub.f32 0.0, %v465
        %v594 = vsub.f32 0.0, %v466
        %v595 = vsub.f32 0.0, %v467
        %v596 = vsub.f32 0.0, %v468
        %v597 = vsub.f32 0.0, %v469
        %v598 = vsub.f32 0.0, %v470
        %v599 = vsub.f32 0.0, %v471
        %v600 = vsub.f32 0.0, %v472
        %v601 = vsub.f32 0.0, %v473
        %v602 = vsub.f32 0.0, %v474
        %v603 = vsub.f32 0.0, %v475
        %v604 = vsub.f32 0.0, %v476
        %v605 = vsub.f32 0.0, %v477
        %v606 = vsub.f32 0.0, %v478
        %v607 = vld [vmem:[%s1] sm:$0x1]
        %609 = vset.pattern.permute.xlu0 0
        %610 = vperm.xlu0 %609, %v479
        %v611 = vpop.permute.xlu0 %610
        %614 = vset.pattern.permute.xlu0 0
        %615 = vperm.xlu0 %614, %v480
        %v616 = vpop.permute.xlu0 %615
        %619 = vset.pattern.permute.xlu0 0
        %620 = vperm.xlu0 %619, %v481
        %v621 = vpop.permute.xlu0 %620
        %624 = vset.pattern.permute.xlu0 0
        %625 = vperm.xlu0 %624, %v482
        %v626 = vpop.permute.xlu0 %625
        %629 = vset.pattern.permute.xlu0 0
        %630 = vperm.xlu0 %629, %v483
        %v631 = vpop.permute.xlu0 %630
        %634 = vset.pattern.permute.xlu0 0
        %635 = vperm.xlu0 %634, %v484
        %v636 = vpop.permute.xlu0 %635
        %639 = vset.pattern.permute.xlu0 0
        %640 = vperm.xlu0 %639, %v485
        %v641 = vpop.permute.xlu0 %640
        %644 = vset.pattern.permute.xlu0 0
        %645 = vperm.xlu0 %644, %v486
        %v646 = vpop.permute.xlu0 %645
        %649 = vset.pattern.permute.xlu0 0
        %650 = vperm.xlu0 %649, %v487
        %v651 = vpop.permute.xlu0 %650
        %654 = vset.pattern.permute.xlu0 0
        %655 = vperm.xlu0 %654, %v488
        %v656 = vpop.permute.xlu0 %655
        %659 = vset.pattern.permute.xlu0 0
        %660 = vperm.xlu0 %659, %v489
        %v661 = vpop.permute.xlu0 %660
        %664 = vset.pattern.permute.xlu0 0
        %665 = vperm.xlu0 %664, %v490
        %v666 = vpop.permute.xlu0 %665
        %669 = vset.pattern.permute.xlu0 0
        %670 = vperm.xlu0 %669, %v491
        %v671 = vpop.permute.xlu0 %670
        %674 = vset.pattern.permute.xlu0 0
        %675 = vperm.xlu0 %674, %v492
        %v676 = vpop.permute.xlu0 %675
        %679 = vset.pattern.permute.xlu0 0
        %680 = vperm.xlu0 %679, %v493
        %v681 = vpop.permute.xlu0 %680
        %684 = vset.pattern.permute.xlu0 0
        %685 = vperm.xlu0 %684, %v494
        %v686 = vpop.permute.xlu0 %685
        %689 = vset.pattern.permute.xlu0 0
        %690 = vperm.xlu0 %689, %v495
        %v691 = vpop.permute.xlu0 %690
        %694 = vset.pattern.permute.xlu0 0
        %695 = vperm.xlu0 %694, %v496
        %v696 = vpop.permute.xlu0 %695
        %699 = vset.pattern.permute.xlu0 0
        %700 = vperm.xlu0 %699, %v497
        %v701 = vpop.permute.xlu0 %700
        %704 = vset.pattern.permute.xlu0 0
        %705 = vperm.xlu0 %704, %v498
        %v706 = vpop.permute.xlu0 %705
        %709 = vset.pattern.permute.xlu0 0
        %710 = vperm.xlu0 %709, %v499
        %v711 = vpop.permute.xlu0 %710
        %714 = vset.pattern.permute.xlu0 0
        %715 = vperm.xlu0 %714, %v500
        %v716 = vpop.permute.xlu0 %715
        %719 = vset.pattern.permute.xlu0 0
        %720 = vperm.xlu0 %719, %v501
        %v721 = vpop.permute.xlu0 %720
        %724 = vset.pattern.permute.xlu0 0
        %725 = vperm.xlu0 %724, %v502
        %v726 = vpop.permute.xlu0 %725
        %729 = vset.pattern.permute.xlu0 0
        %730 = vperm.xlu0 %729, %v503
        %v731 = vpop.permute.xlu0 %730
        %734 = vset.pattern.permute.xlu0 0
        %735 = vperm.xlu0 %734, %v504
        %v736 = vpop.permute.xlu0 %735
        %739 = vset.pattern.permute.xlu0 0
        %740 = vperm.xlu0 %739, %v505
        %v741 = vpop.permute.xlu0 %740
        %744 = vset.pattern.permute.xlu0 0
        %745 = vperm.xlu0 %744, %v506
        %v746 = vpop.permute.xlu0 %745
        %749 = vset.pattern.permute.xlu0 0
        %750 = vperm.xlu0 %749, %v507
        %v751 = vpop.permute.xlu0 %750
        %754 = vset.pattern.permute.xlu0 0
        %755 = vperm.xlu0 %754, %v508
        %v756 = vpop.permute.xlu0 %755
        %759 = vset.pattern.permute.xlu0 0
        %760 = vperm.xlu0 %759, %v509
        %v761 = vpop.permute.xlu0 %760
        %764 = vset.pattern.permute.xlu0 0
        %765 = vperm.xlu0 %764, %v510
        %v766 = vpop.permute.xlu0 %765
        %769 = vset.pattern.permute.xlu0 0
        %770 = vperm.xlu0 %769, %v511
        %v771 = vpop.permute.xlu0 %770
        %774 = vset.pattern.permute.xlu0 0
        %775 = vperm.xlu0 %774, %v512
        %v776 = vpop.permute.xlu0 %775
        %779 = vset.pattern.permute.xlu0 0
        %780 = vperm.xlu0 %779, %v513
        %v781 = vpop.permute.xlu0 %780
        %784 = vset.pattern.permute.xlu0 0
        %785 = vperm.xlu0 %784, %v514
        %v786 = vpop.permute.xlu0 %785
        %789 = vset.pattern.permute.xlu0 0
        %790 = vperm.xlu0 %789, %v515
        %v791 = vpop.permute.xlu0 %790
        %794 = vset.pattern.permute.xlu0 0
        %795 = vperm.xlu0 %794, %v516
        %v796 = vpop.permute.xlu0 %795
        %799 = vset.pattern.permute.xlu0 0
        %800 = vperm.xlu0 %799, %v517
        %v801 = vpop.permute.xlu0 %800
        %804 = vset.pattern.permute.xlu0 0
        %805 = vperm.xlu0 %804, %v518
        %v806 = vpop.permute.xlu0 %805
        %809 = vset.pattern.permute.xlu0 0
        %810 = vperm.xlu0 %809, %v519
        %v811 = vpop.permute.xlu0 %810
        %814 = vset.pattern.permute.xlu0 0
        %815 = vperm.xlu0 %814, %v520
        %v816 = vpop.permute.xlu0 %815
        %819 = vset.pattern.permute.xlu0 0
        %820 = vperm.xlu0 %819, %v521
        %v821 = vpop.permute.xlu0 %820
        %824 = vset.pattern.permute.xlu0 0
        %825 = vperm.xlu0 %824, %v522
        %v826 = vpop.permute.xlu0 %825
        %829 = vset.pattern.permute.xlu0 0
        %830 = vperm.xlu0 %829, %v523
        %v831 = vpop.permute.xlu0 %830
        %834 = vset.pattern.permute.xlu0 0
        %835 = vperm.xlu0 %834, %v524
        %v836 = vpop.permute.xlu0 %835
        %839 = vset.pattern.permute.xlu0 0
        %840 = vperm.xlu0 %839, %v525
        %v841 = vpop.permute.xlu0 %840
        %844 = vset.pattern.permute.xlu0 0
        %845 = vperm.xlu0 %844, %v526
        %v846 = vpop.permute.xlu0 %845
        %849 = vset.pattern.permute.xlu0 0
        %850 = vperm.xlu0 %849, %v527
        %v851 = vpop.permute.xlu0 %850
        %854 = vset.pattern.permute.xlu0 0
        %855 = vperm.xlu0 %854, %v528
        %v856 = vpop.permute.xlu0 %855
        %859 = vset.pattern.permute.xlu0 0
        %860 = vperm.xlu0 %859, %v529
        %v861 = vpop.permute.xlu0 %860
        %864 = vset.pattern.permute.xlu0 0
        %865 = vperm.xlu0 %864, %v530
        %v866 = vpop.permute.xlu0 %865
        %869 = vset.pattern.permute.xlu0 0
        %870 = vperm.xlu0 %869, %v531
        %v871 = vpop.permute.xlu0 %870
        %874 = vset.pattern.permute.xlu0 0
        %875 = vperm.xlu0 %874, %v532
        %v876 = vpop.permute.xlu0 %875
        %879 = vset.pattern.permute.xlu0 0
        %880 = vperm.xlu0 %879, %v533
        %v881 = vpop.permute.xlu0 %880
        %884 = vset.pattern.permute.xlu0 0
        %885 = vperm.xlu0 %884, %v534
        %v886 = vpop.permute.xlu0 %885
        %889 = vset.pattern.permute.xlu0 0
        %890 = vperm.xlu0 %889, %v535
        %v891 = vpop.permute.xlu0 %890
        %894 = vset.pattern.permute.xlu0 0
        %895 = vperm.xlu0 %894, %v536
        %v896 = vpop.permute.xlu0 %895
        %899 = vset.pattern.permute.xlu0 0
        %900 = vperm.xlu0 %899, %v537
        %v901 = vpop.permute.xlu0 %900
        %904 = vset.pattern.permute.xlu0 0
        %905 = vperm.xlu0 %904, %v538
        %v906 = vpop.permute.xlu0 %905
        %909 = vset.pattern.permute.xlu0 0
        %910 = vperm.xlu0 %909, %v539
        %v911 = vpop.permute.xlu0 %910
        %914 = vset.pattern.permute.xlu0 0
        %915 = vperm.xlu0 %914, %v540
        %v916 = vpop.permute.xlu0 %915
        %919 = vset.pattern.permute.xlu0 0
        %920 = vperm.xlu0 %919, %v541
        %v921 = vpop.permute.xlu0 %920
        %924 = vset.pattern.permute.xlu0 0
        %925 = vperm.xlu0 %924, %v542
        %v926 = vpop.permute.xlu0 %925
        %929 = vset.pattern.permute.xlu0 0
        %930 = vperm.xlu0 %929, %v543
        %v931 = vpop.permute.xlu0 %930
        %934 = vset.pattern.permute.xlu0 0
        %935 = vperm.xlu0 %934, %v544
        %v936 = vpop.permute.xlu0 %935
        %939 = vset.pattern.permute.xlu0 0
        %940 = vperm.xlu0 %939, %v545
        %v941 = vpop.permute.xlu0 %940
        %944 = vset.pattern.permute.xlu0 0
        %945 = vperm.xlu0 %944, %v546
        %v946 = vpop.permute.xlu0 %945
        %949 = vset.pattern.permute.xlu0 0
        %950 = vperm.xlu0 %949, %v547
        %v951 = vpop.permute.xlu0 %950
        %954 = vset.pattern.permute.xlu0 0
        %955 = vperm.xlu0 %954, %v548
        %v956 = vpop.permute.xlu0 %955
        %959 = vset.pattern.permute.xlu0 0
        %960 = vperm.xlu0 %959, %v549
        %v961 = vpop.permute.xlu0 %960
        %964 = vset.pattern.permute.xlu0 0
        %965 = vperm.xlu0 %964, %v550
        %v966 = vpop.permute.xlu0 %965
        %969 = vset.pattern.permute.xlu0 0
        %970 = vperm.xlu0 %969, %v551
        %v971 = vpop.permute.xlu0 %970
        %974 = vset.pattern.permute.xlu0 0
        %975 = vperm.xlu0 %974, %v552
        %v976 = vpop.permute.xlu0 %975
        %979 = vset.pattern.permute.xlu0 0
        %980 = vperm.xlu0 %979, %v553
        %v981 = vpop.permute.xlu0 %980
        %984 = vset.pattern.permute.xlu0 0
        %985 = vperm.xlu0 %984, %v554
        %v986 = vpop.permute.xlu0 %985
        %989 = vset.pattern.permute.xlu0 0
        %990 = vperm.xlu0 %989, %v555
        %v991 = vpop.permute.xlu0 %990
        %994 = vset.pattern.permute.xlu0 0
        %995 = vperm.xlu0 %994, %v556
        %v996 = vpop.permute.xlu0 %995
        %999 = vset.pattern.permute.xlu0 0
        %1000 = vperm.xlu0 %999, %v557
        %v1001 = vpop.permute.xlu0 %1000
        %1004 = vset.pattern.permute.xlu0 0
        %1005 = vperm.xlu0 %1004, %v558
        %v1006 = vpop.permute.xlu0 %1005
        %1009 = vset.pattern.permute.xlu0 0
        %1010 = vperm.xlu0 %1009, %v559
        %v1011 = vpop.permute.xlu0 %1010
        %1014 = vset.pattern.permute.xlu0 0
        %1015 = vperm.xlu0 %1014, %v560
        %v1016 = vpop.permute.xlu0 %1015
        %1019 = vset.pattern.permute.xlu0 0
        %1020 = vperm.xlu0 %1019, %v561
        %v1021 = vpop.permute.xlu0 %1020
        %1024 = vset.pattern.permute.xlu0 0
        %1025 = vperm.xlu0 %1024, %v562
        %v1026 = vpop.permute.xlu0 %1025
        %1029 = vset.pattern.permute.xlu0 0
        %1030 = vperm.xlu0 %1029, %v563
        %v1031 = vpop.permute.xlu0 %1030
        %1034 = vset.pattern.permute.xlu0 0
        %1035 = vperm.xlu0 %1034, %v564
        %v1036 = vpop.permute.xlu0 %1035
        %1039 = vset.pattern.permute.xlu0 0
        %1040 = vperm.xlu0 %1039, %v565
        %v1041 = vpop.permute.xlu0 %1040
        %1044 = vset.pattern.permute.xlu0 0
        %1045 = vperm.xlu0 %1044, %v566
        %v1046 = vpop.permute.xlu0 %1045
        %1049 = vset.pattern.permute.xlu0 0
        %1050 = vperm.xlu0 %1049, %v567
        %v1051 = vpop.permute.xlu0 %1050
        %1054 = vset.pattern.permute.xlu0 0
        %1055 = vperm.xlu0 %1054, %v568
        %v1056 = vpop.permute.xlu0 %1055
        %1059 = vset.pattern.permute.xlu0 0
        %1060 = vperm.xlu0 %1059, %v569
        %v1061 = vpop.permute.xlu0 %1060
        %1064 = vset.pattern.permute.xlu0 0
        %1065 = vperm.xlu0 %1064, %v570
        %v1066 = vpop.permute.xlu0 %1065
        %1069 = vset.pattern.permute.xlu0 0
        %1070 = vperm.xlu0 %1069, %v571
        %v1071 = vpop.permute.xlu0 %1070
        %1074 = vset.pattern.permute.xlu0 0
        %1075 = vperm.xlu0 %1074, %v572
        %v1076 = vpop.permute.xlu0 %1075
        %1079 = vset.pattern.permute.xlu0 0
        %1080 = vperm.xlu0 %1079, %v573
        %v1081 = vpop.permute.xlu0 %1080
        %1084 = vset.pattern.permute.xlu0 0
        %1085 = vperm.xlu0 %1084, %v574
        %v1086 = vpop.permute.xlu0 %1085
        %1089 = vset.pattern.permute.xlu0 0
        %1090 = vperm.xlu0 %1089, %v575
        %v1091 = vpop.permute.xlu0 %1090
        %1094 = vset.pattern.permute.xlu0 0
        %1095 = vperm.xlu0 %1094, %v576
        %v1096 = vpop.permute.xlu0 %1095
        %1099 = vset.pattern.permute.xlu0 0
        %1100 = vperm.xlu0 %1099, %v577
        %v1101 = vpop.permute.xlu0 %1100
        %1104 = vset.pattern.permute.xlu0 0
        %1105 = vperm.xlu0 %1104, %v578
        %v1106 = vpop.permute.xlu0 %1105
        %1109 = vset.pattern.permute.xlu0 0
        %1110 = vperm.xlu0 %1109, %v579
        %v1111 = vpop.permute.xlu0 %1110
        %1114 = vset.pattern.permute.xlu0 0
        %1115 = vperm.xlu0 %1114, %v580
        %v1116 = vpop.permute.xlu0 %1115
        %1119 = vset.pattern.permute.xlu0 0
        %1120 = vperm.xlu0 %1119, %v581
        %v1121 = vpop.permute.xlu0 %1120
        %1124 = vset.pattern.permute.xlu0 0
        %1125 = vperm.xlu0 %1124, %v582
        %v1126 = vpop.permute.xlu0 %1125
        %1129 = vset.pattern.permute.xlu0 0
        %1130 = vperm.xlu0 %1129, %v583
        %v1131 = vpop.permute.xlu0 %1130
        %1134 = vset.pattern.permute.xlu0 0
        %1135 = vperm.xlu0 %1134, %v584
        %v1136 = vpop.permute.xlu0 %1135
        %1139 = vset.pattern.permute.xlu0 0
        %1140 = vperm.xlu0 %1139, %v585
        %v1141 = vpop.permute.xlu0 %1140
        %1144 = vset.pattern.permute.xlu0 0
        %1145 = vperm.xlu0 %1144, %v586
        %v1146 = vpop.permute.xlu0 %1145
        %1149 = vset.pattern.permute.xlu0 0
        %1150 = vperm.xlu0 %1149, %v587
        %v1151 = vpop.permute.xlu0 %1150
        %1154 = vset.pattern.permute.xlu0 0
        %1155 = vperm.xlu0 %1154, %v588
        %v1156 = vpop.permute.xlu0 %1155
        %1159 = vset.pattern.permute.xlu0 0
        %1160 = vperm.xlu0 %1159, %v589
        %v1161 = vpop.permute.xlu0 %1160
        %1164 = vset.pattern.permute.xlu0 0
        %1165 = vperm.xlu0 %1164, %v590
        %v1166 = vpop.permute.xlu0 %1165
        %1169 = vset.pattern.permute.xlu0 0
        %1170 = vperm.xlu0 %1169, %v591
        %v1171 = vpop.permute.xlu0 %1170
        %1174 = vset.pattern.permute.xlu0 0
        %1175 = vperm.xlu0 %1174, %v592
        %v1176 = vpop.permute.xlu0 %1175
        %1179 = vset.pattern.permute.xlu0 0
        %1180 = vperm.xlu0 %1179, %v593
        %v1181 = vpop.permute.xlu0 %1180
        %1184 = vset.pattern.permute.xlu0 0
        %1185 = vperm.xlu0 %1184, %v594
        %v1186 = vpop.permute.xlu0 %1185
        %1189 = vset.pattern.permute.xlu0 0
        %1190 = vperm.xlu0 %1189, %v595
        %v1191 = vpop.permute.xlu0 %1190
        %1194 = vset.pattern.permute.xlu0 0
        %1195 = vperm.xlu0 %1194, %v596
        %v1196 = vpop.permute.xlu0 %1195
        %1199 = vset.pattern.permute.xlu0 0
        %1200 = vperm.xlu0 %1199, %v597
        %v1201 = vpop.permute.xlu0 %1200
        %1204 = vset.pattern.permute.xlu0 0
        %1205 = vperm.xlu0 %1204, %v598
        %v1206 = vpop.permute.xlu0 %1205
        %1209 = vset.pattern.permute.xlu0 0
        %1210 = vperm.xlu0 %1209, %v599
        %v1211 = vpop.permute.xlu0 %1210
        %1214 = vset.pattern.permute.xlu0 0
        %1215 = vperm.xlu0 %1214, %v600
        %v1216 = vpop.permute.xlu0 %1215
        %1219 = vset.pattern.permute.xlu0 0
        %1220 = vperm.xlu0 %1219, %v601
        %v1221 = vpop.permute.xlu0 %1220
        %1224 = vset.pattern.permute.xlu0 0
        %1225 = vperm.xlu0 %1224, %v602
        %v1226 = vpop.permute.xlu0 %1225
        %1229 = vset.pattern.permute.xlu0 0
        %1230 = vperm.xlu0 %1229, %v603
        %v1231 = vpop.permute.xlu0 %1230
        %1234 = vset.pattern.permute.xlu0 0
        %1235 = vperm.xlu0 %1234, %v604
        %v1236 = vpop.permute.xlu0 %1235
        %1239 = vset.pattern.permute.xlu0 0
        %1240 = vperm.xlu0 %1239, %v605
        %v1241 = vpop.permute.xlu0 %1240
        %1244 = vset.pattern.permute.xlu0 0
        %1245 = vperm.xlu0 %1244, %v606
        %v1246 = vpop.permute.xlu0 %1245
        %v1249 = vlaneseq
        %v1250 = vshrl.u32 %v1249, 7
        %v1251 = vsub.s32 0, %v1250
        %v1252 = vrot.slane %v607, %v1251
        %v1254 = vmul.f32 %v611, %v1252
        %v1255 = vmul.f32 %v616, %v1252
        %v1256 = vmul.f32 %v621, %v1252
        %v1257 = vmul.f32 %v626, %v1252
        %v1258 = vmul.f32 %v631, %v1252
        %v1259 = vmul.f32 %v636, %v1252
        %v1260 = vmul.f32 %v641, %v1252
        %v1261 = vmul.f32 %v646, %v1252
        %v1262 = vmul.f32 %v651, %v1252
        %v1263 = vmul.f32 %v656, %v1252
        %v1264 = vmul.f32 %v661, %v1252
        %v1265 = vmul.f32 %v666, %v1252
        %v1266 = vmul.f32 %v671, %v1252
        %v1267 = vmul.f32 %v676, %v1252
        %v1268 = vmul.f32 %v681, %v1252
        %v1269 = vmul.f32 %v686, %v1252
        %v1270 = vmul.f32 %v691, %v1252
        %v1271 = vmul.f32 %v696, %v1252
        %v1272 = vmul.f32 %v701, %v1252
        %v1273 = vmul.f32 %v706, %v1252
        %v1274 = vmul.f32 %v711, %v1252
        %v1275 = vmul.f32 %v716, %v1252
        %v1276 = vmul.f32 %v721, %v1252
        %v1277 = vmul.f32 %v726, %v1252
        %v1278 = vmul.f32 %v731, %v1252
        %v1279 = vmul.f32 %v736, %v1252
        %v1280 = vmul.f32 %v741, %v1252
        %v1281 = vmul.f32 %v746, %v1252
        %v1282 = vmul.f32 %v751, %v1252
        %v1283 = vmul.f32 %v756, %v1252
        %v1284 = vmul.f32 %v761, %v1252
        %v1285 = vmul.f32 %v766, %v1252
        %v1286 = vmul.f32 %v771, %v1252
        %v1287 = vmul.f32 %v776, %v1252
        %v1288 = vmul.f32 %v781, %v1252
        %v1289 = vmul.f32 %v786, %v1252
        %v1290 = vmul.f32 %v791, %v1252
        %v1291 = vmul.f32 %v796, %v1252
        %v1292 = vmul.f32 %v801, %v1252
        %v1293 = vmul.f32 %v806, %v1252
        %v1294 = vmul.f32 %v811, %v1252
        %v1295 = vmul.f32 %v816, %v1252
        %v1296 = vmul.f32 %v821, %v1252
        %v1297 = vmul.f32 %v826, %v1252
        %v1298 = vmul.f32 %v831, %v1252
        %v1299 = vmul.f32 %v836, %v1252
        %v1300 = vmul.f32 %v841, %v1252
        %v1301 = vmul.f32 %v846, %v1252
        %v1302 = vmul.f32 %v851, %v1252
        %v1303 = vmul.f32 %v856, %v1252
        %v1304 = vmul.f32 %v861, %v1252
        %v1305 = vmul.f32 %v866, %v1252
        %v1306 = vmul.f32 %v871, %v1252
        %v1307 = vmul.f32 %v876, %v1252
        %v1308 = vmul.f32 %v881, %v1252
        %v1309 = vmul.f32 %v886, %v1252
        %v1310 = vmul.f32 %v891, %v1252
        %v1311 = vmul.f32 %v896, %v1252
        %v1312 = vmul.f32 %v901, %v1252
        %v1313 = vmul.f32 %v906, %v1252
        %v1314 = vmul.f32 %v911, %v1252
        %v1315 = vmul.f32 %v916, %v1252
        %v1316 = vmul.f32 %v921, %v1252
        %v1317 = vmul.f32 %v926, %v1252
        %v1318 = vmul.f32 %v931, %v1252
        %v1319 = vmul.f32 %v936, %v1252
        %v1320 = vmul.f32 %v941, %v1252
        %v1321 = vmul.f32 %v946, %v1252
        %v1322 = vmul.f32 %v951, %v1252
        %v1323 = vmul.f32 %v956, %v1252
        %v1324 = vmul.f32 %v961, %v1252
        %v1325 = vmul.f32 %v966, %v1252
        %v1326 = vmul.f32 %v971, %v1252
        %v1327 = vmul.f32 %v976, %v1252
        %v1328 = vmul.f32 %v981, %v1252
        %v1329 = vmul.f32 %v986, %v1252
        %v1330 = vmul.f32 %v991, %v1252
        %v1331 = vmul.f32 %v996, %v1252
        %v1332 = vmul.f32 %v1001, %v1252
        %v1333 = vmul.f32 %v1006, %v1252
        %v1334 = vmul.f32 %v1011, %v1252
        %v1335 = vmul.f32 %v1016, %v1252
        %v1336 = vmul.f32 %v1021, %v1252
        %v1337 = vmul.f32 %v1026, %v1252
        %v1338 = vmul.f32 %v1031, %v1252
        %v1339 = vmul.f32 %v1036, %v1252
        %v1340 = vmul.f32 %v1041, %v1252
        %v1341 = vmul.f32 %v1046, %v1252
        %v1342 = vmul.f32 %v1051, %v1252
        %v1343 = vmul.f32 %v1056, %v1252
        %v1344 = vmul.f32 %v1061, %v1252
        %v1345 = vmul.f32 %v1066, %v1252
        %v1346 = vmul.f32 %v1071, %v1252
        %v1347 = vmul.f32 %v1076, %v1252
        %v1348 = vmul.f32 %v1081, %v1252
        %v1349 = vmul.f32 %v1086, %v1252
        %v1350 = vmul.f32 %v1091, %v1252
        %v1351 = vmul.f32 %v1096, %v1252
        %v1352 = vmul.f32 %v1101, %v1252
        %v1353 = vmul.f32 %v1106, %v1252
        %v1354 = vmul.f32 %v1111, %v1252
        %v1355 = vmul.f32 %v1116, %v1252
        %v1356 = vmul.f32 %v1121, %v1252
        %v1357 = vmul.f32 %v1126, %v1252
        %v1358 = vmul.f32 %v1131, %v1252
        %v1359 = vmul.f32 %v1136, %v1252
        %v1360 = vmul.f32 %v1141, %v1252
        %v1361 = vmul.f32 %v1146, %v1252
        %v1362 = vmul.f32 %v1151, %v1252
        %v1363 = vmul.f32 %v1156, %v1252
        %v1364 = vmul.f32 %v1161, %v1252
        %v1365 = vmul.f32 %v1166, %v1252
        %v1366 = vmul.f32 %v1171, %v1252
        %v1367 = vmul.f32 %v1176, %v1252
        %v1368 = vmul.f32 %v1181, %v1252
        %v1369 = vmul.f32 %v1186, %v1252
        %v1370 = vmul.f32 %v1191, %v1252
        %v1371 = vmul.f32 %v1196, %v1252
        %v1372 = vmul.f32 %v1201, %v1252
        %v1373 = vmul.f32 %v1206, %v1252
        %v1374 = vmul.f32 %v1211, %v1252
        %v1375 = vmul.f32 %v1216, %v1252
        %v1376 = vmul.f32 %v1221, %v1252
        %v1377 = vmul.f32 %v1226, %v1252
        %v1378 = vmul.f32 %v1231, %v1252
        %v1379 = vmul.f32 %v1236, %v1252
        %v1380 = vmul.f32 %v1241, %v1252
        %v1381 = vmul.f32 %v1246, %v1252
        %v1382 = vld [vmem:[%s2] sm:$0x1]
        %1384 = vset.pattern.permute.xlu0 0
        %1385 = vperm.xlu0 %1384, %v223
        %v1386 = vpop.permute.xlu0 %1385
        %1389 = vset.pattern.permute.xlu0 0
        %1390 = vperm.xlu0 %1389, %v224
        %v1391 = vpop.permute.xlu0 %1390
        %1394 = vset.pattern.permute.xlu0 0
        %1395 = vperm.xlu0 %1394, %v225
        %v1396 = vpop.permute.xlu0 %1395
        %1399 = vset.pattern.permute.xlu0 0
        %1400 = vperm.xlu0 %1399, %v226
        %v1401 = vpop.permute.xlu0 %1400
        %1404 = vset.pattern.permute.xlu0 0
        %1405 = vperm.xlu0 %1404, %v227
        %v1406 = vpop.permute.xlu0 %1405
        %1409 = vset.pattern.permute.xlu0 0
        %1410 = vperm.xlu0 %1409, %v228
        %v1411 = vpop.permute.xlu0 %1410
        %1414 = vset.pattern.permute.xlu0 0
        %1415 = vperm.xlu0 %1414, %v229
        %v1416 = vpop.permute.xlu0 %1415
        %1419 = vset.pattern.permute.xlu0 0
        %1420 = vperm.xlu0 %1419, %v230
        %v1421 = vpop.permute.xlu0 %1420
        %1424 = vset.pattern.permute.xlu0 0
        %1425 = vperm.xlu0 %1424, %v231
        %v1426 = vpop.permute.xlu0 %1425
        %1429 = vset.pattern.permute.xlu0 0
        %1430 = vperm.xlu0 %1429, %v232
        %v1431 = vpop.permute.xlu0 %1430
        %1434 = vset.pattern.permute.xlu0 0
        %1435 = vperm.xlu0 %1434, %v233
        %v1436 = vpop.permute.xlu0 %1435
        %1439 = vset.pattern.permute.xlu0 0
        %1440 = vperm.xlu0 %1439, %v234
        %v1441 = vpop.permute.xlu0 %1440
        %1444 = vset.pattern.permute.xlu0 0
        %1445 = vperm.xlu0 %1444, %v235
        %v1446 = vpop.permute.xlu0 %1445
        %1449 = vset.pattern.permute.xlu0 0
        %1450 = vperm.xlu0 %1449, %v236
        %v1451 = vpop.permute.xlu0 %1450
        %1454 = vset.pattern.permute.xlu0 0
        %1455 = vperm.xlu0 %1454, %v237
        %v1456 = vpop.permute.xlu0 %1455
        %1459 = vset.pattern.permute.xlu0 0
        %1460 = vperm.xlu0 %1459, %v238
        %v1461 = vpop.permute.xlu0 %1460
        %1464 = vset.pattern.permute.xlu0 0
        %1465 = vperm.xlu0 %1464, %v239
        %v1466 = vpop.permute.xlu0 %1465
        %1469 = vset.pattern.permute.xlu0 0
        %1470 = vperm.xlu0 %1469, %v240
        %v1471 = vpop.permute.xlu0 %1470
        %1474 = vset.pattern.permute.xlu0 0
        %1475 = vperm.xlu0 %1474, %v241
        %v1476 = vpop.permute.xlu0 %1475
        %1479 = vset.pattern.permute.xlu0 0
        %1480 = vperm.xlu0 %1479, %v242
        %v1481 = vpop.permute.xlu0 %1480
        %1484 = vset.pattern.permute.xlu0 0
        %1485 = vperm.xlu0 %1484, %v243
        %v1486 = vpop.permute.xlu0 %1485
        %1489 = vset.pattern.permute.xlu0 0
        %1490 = vperm.xlu0 %1489, %v244
        %v1491 = vpop.permute.xlu0 %1490
        %1494 = vset.pattern.permute.xlu0 0
        %1495 = vperm.xlu0 %1494, %v245
        %v1496 = vpop.permute.xlu0 %1495
        %1499 = vset.pattern.permute.xlu0 0
        %1500 = vperm.xlu0 %1499, %v246
        %v1501 = vpop.permute.xlu0 %1500
        %1504 = vset.pattern.permute.xlu0 0
        %1505 = vperm.xlu0 %1504, %v247
        %v1506 = vpop.permute.xlu0 %1505
        %1509 = vset.pattern.permute.xlu0 0
        %1510 = vperm.xlu0 %1509, %v248
        %v1511 = vpop.permute.xlu0 %1510
        %1514 = vset.pattern.permute.xlu0 0
        %1515 = vperm.xlu0 %1514, %v249
        %v1516 = vpop.permute.xlu0 %1515
        %1519 = vset.pattern.permute.xlu0 0
        %1520 = vperm.xlu0 %1519, %v250
        %v1521 = vpop.permute.xlu0 %1520
        %1524 = vset.pattern.permute.xlu0 0
        %1525 = vperm.xlu0 %1524, %v251
        %v1526 = vpop.permute.xlu0 %1525
        %1529 = vset.pattern.permute.xlu0 0
        %1530 = vperm.xlu0 %1529, %v252
        %v1531 = vpop.permute.xlu0 %1530
        %1534 = vset.pattern.permute.xlu0 0
        %1535 = vperm.xlu0 %1534, %v253
        %v1536 = vpop.permute.xlu0 %1535
        %1539 = vset.pattern.permute.xlu0 0
        %1540 = vperm.xlu0 %1539, %v254
        %v1541 = vpop.permute.xlu0 %1540
        %1544 = vset.pattern.permute.xlu0 0
        %1545 = vperm.xlu0 %1544, %v255
        %v1546 = vpop.permute.xlu0 %1545
        %1549 = vset.pattern.permute.xlu0 0
        %1550 = vperm.xlu0 %1549, %v256
        %v1551 = vpop.permute.xlu0 %1550
        %1554 = vset.pattern.permute.xlu0 0
        %1555 = vperm.xlu0 %1554, %v257
        %v1556 = vpop.permute.xlu0 %1555
        %1559 = vset.pattern.permute.xlu0 0
        %1560 = vperm.xlu0 %1559, %v258
        %v1561 = vpop.permute.xlu0 %1560
        %1564 = vset.pattern.permute.xlu0 0
        %1565 = vperm.xlu0 %1564, %v259
        %v1566 = vpop.permute.xlu0 %1565
        %1569 = vset.pattern.permute.xlu0 0
        %1570 = vperm.xlu0 %1569, %v260
        %v1571 = vpop.permute.xlu0 %1570
        %1574 = vset.pattern.permute.xlu0 0
        %1575 = vperm.xlu0 %1574, %v261
        %v1576 = vpop.permute.xlu0 %1575
        %1579 = vset.pattern.permute.xlu0 0
        %1580 = vperm.xlu0 %1579, %v262
        %v1581 = vpop.permute.xlu0 %1580
        %1584 = vset.pattern.permute.xlu0 0
        %1585 = vperm.xlu0 %1584, %v263
        %v1586 = vpop.permute.xlu0 %1585
        %1589 = vset.pattern.permute.xlu0 0
        %1590 = vperm.xlu0 %1589, %v264
        %v1591 = vpop.permute.xlu0 %1590
        %1594 = vset.pattern.permute.xlu0 0
        %1595 = vperm.xlu0 %1594, %v265
        %v1596 = vpop.permute.xlu0 %1595
        %1599 = vset.pattern.permute.xlu0 0
        %1600 = vperm.xlu0 %1599, %v266
        %v1601 = vpop.permute.xlu0 %1600
        %1604 = vset.pattern.permute.xlu0 0
        %1605 = vperm.xlu0 %1604, %v267
        %v1606 = vpop.permute.xlu0 %1605
        %1609 = vset.pattern.permute.xlu0 0
        %1610 = vperm.xlu0 %1609, %v268
        %v1611 = vpop.permute.xlu0 %1610
        %1614 = vset.pattern.permute.xlu0 0
        %1615 = vperm.xlu0 %1614, %v269
        %v1616 = vpop.permute.xlu0 %1615
        %1619 = vset.pattern.permute.xlu0 0
        %1620 = vperm.xlu0 %1619, %v270
        %v1621 = vpop.permute.xlu0 %1620
        %1624 = vset.pattern.permute.xlu0 0
        %1625 = vperm.xlu0 %1624, %v271
        %v1626 = vpop.permute.xlu0 %1625
        %1629 = vset.pattern.permute.xlu0 0
        %1630 = vperm.xlu0 %1629, %v272
        %v1631 = vpop.permute.xlu0 %1630
        %1634 = vset.pattern.permute.xlu0 0
        %1635 = vperm.xlu0 %1634, %v273
        %v1636 = vpop.permute.xlu0 %1635
        %1639 = vset.pattern.permute.xlu0 0
        %1640 = vperm.xlu0 %1639, %v274
        %v1641 = vpop.permute.xlu0 %1640
        %1644 = vset.pattern.permute.xlu0 0
        %1645 = vperm.xlu0 %1644, %v275
        %v1646 = vpop.permute.xlu0 %1645
        %1649 = vset.pattern.permute.xlu0 0
        %1650 = vperm.xlu0 %1649, %v276
        %v1651 = vpop.permute.xlu0 %1650
        %1654 = vset.pattern.permute.xlu0 0
        %1655 = vperm.xlu0 %1654, %v277
        %v1656 = vpop.permute.xlu0 %1655
        %1659 = vset.pattern.permute.xlu0 0
        %1660 = vperm.xlu0 %1659, %v278
        %v1661 = vpop.permute.xlu0 %1660
        %1664 = vset.pattern.permute.xlu0 0
        %1665 = vperm.xlu0 %1664, %v279
        %v1666 = vpop.permute.xlu0 %1665
        %1669 = vset.pattern.permute.xlu0 0
        %1670 = vperm.xlu0 %1669, %v280
        %v1671 = vpop.permute.xlu0 %1670
        %1674 = vset.pattern.permute.xlu0 0
        %1675 = vperm.xlu0 %1674, %v281
        %v1676 = vpop.permute.xlu0 %1675
        %1679 = vset.pattern.permute.xlu0 0
        %1680 = vperm.xlu0 %1679, %v282
        %v1681 = vpop.permute.xlu0 %1680
        %1684 = vset.pattern.permute.xlu0 0
        %1685 = vperm.xlu0 %1684, %v283
        %v1686 = vpop.permute.xlu0 %1685
        %1689 = vset.pattern.permute.xlu0 0
        %1690 = vperm.xlu0 %1689, %v284
        %v1691 = vpop.permute.xlu0 %1690
        %1694 = vset.pattern.permute.xlu0 0
        %1695 = vperm.xlu0 %1694, %v285
        %v1696 = vpop.permute.xlu0 %1695
        %1699 = vset.pattern.permute.xlu0 0
        %1700 = vperm.xlu0 %1699, %v286
        %v1701 = vpop.permute.xlu0 %1700
        %1704 = vset.pattern.permute.xlu0 0
        %1705 = vperm.xlu0 %1704, %v287
        %v1706 = vpop.permute.xlu0 %1705
        %1709 = vset.pattern.permute.xlu0 0
        %1710 = vperm.xlu0 %1709, %v288
        %v1711 = vpop.permute.xlu0 %1710
        %1714 = vset.pattern.permute.xlu0 0
        %1715 = vperm.xlu0 %1714, %v289
        %v1716 = vpop.permute.xlu0 %1715
        %1719 = vset.pattern.permute.xlu0 0
        %1720 = vperm.xlu0 %1719, %v290
        %v1721 = vpop.permute.xlu0 %1720
        %1724 = vset.pattern.permute.xlu0 0
        %1725 = vperm.xlu0 %1724, %v291
        %v1726 = vpop.permute.xlu0 %1725
        %1729 = vset.pattern.permute.xlu0 0
        %1730 = vperm.xlu0 %1729, %v292
        %v1731 = vpop.permute.xlu0 %1730
        %1734 = vset.pattern.permute.xlu0 0
        %1735 = vperm.xlu0 %1734, %v293
        %v1736 = vpop.permute.xlu0 %1735
        %1739 = vset.pattern.permute.xlu0 0
        %1740 = vperm.xlu0 %1739, %v294
        %v1741 = vpop.permute.xlu0 %1740
        %1744 = vset.pattern.permute.xlu0 0
        %1745 = vperm.xlu0 %1744, %v295
        %v1746 = vpop.permute.xlu0 %1745
        %1749 = vset.pattern.permute.xlu0 0
        %1750 = vperm.xlu0 %1749, %v296
        %v1751 = vpop.permute.xlu0 %1750
        %1754 = vset.pattern.permute.xlu0 0
        %1755 = vperm.xlu0 %1754, %v297
        %v1756 = vpop.permute.xlu0 %1755
        %1759 = vset.pattern.permute.xlu0 0
        %1760 = vperm.xlu0 %1759, %v298
        %v1761 = vpop.permute.xlu0 %1760
        %1764 = vset.pattern.permute.xlu0 0
        %1765 = vperm.xlu0 %1764, %v299
        %v1766 = vpop.permute.xlu0 %1765
        %1769 = vset.pattern.permute.xlu0 0
        %1770 = vperm.xlu0 %1769, %v300
        %v1771 = vpop.permute.xlu0 %1770
        %1774 = vset.pattern.permute.xlu0 0
        %1775 = vperm.xlu0 %1774, %v301
        %v1776 = vpop.permute.xlu0 %1775
        %1779 = vset.pattern.permute.xlu0 0
        %1780 = vperm.xlu0 %1779, %v302
        %v1781 = vpop.permute.xlu0 %1780
        %1784 = vset.pattern.permute.xlu0 0
        %1785 = vperm.xlu0 %1784, %v303
        %v1786 = vpop.permute.xlu0 %1785
        %1789 = vset.pattern.permute.xlu0 0
        %1790 = vperm.xlu0 %1789, %v304
        %v1791 = vpop.permute.xlu0 %1790
        %1794 = vset.pattern.permute.xlu0 0
        %1795 = vperm.xlu0 %1794, %v305
        %v1796 = vpop.permute.xlu0 %1795
        %1799 = vset.pattern.permute.xlu0 0
        %1800 = vperm.xlu0 %1799, %v306
        %v1801 = vpop.permute.xlu0 %1800
        %1804 = vset.pattern.permute.xlu0 0
        %1805 = vperm.xlu0 %1804, %v307
        %v1806 = vpop.permute.xlu0 %1805
        %1809 = vset.pattern.permute.xlu0 0
        %1810 = vperm.xlu0 %1809, %v308
        %v1811 = vpop.permute.xlu0 %1810
        %1814 = vset.pattern.permute.xlu0 0
        %1815 = vperm.xlu0 %1814, %v309
        %v1816 = vpop.permute.xlu0 %1815
        %1819 = vset.pattern.permute.xlu0 0
        %1820 = vperm.xlu0 %1819, %v310
        %v1821 = vpop.permute.xlu0 %1820
        %1824 = vset.pattern.permute.xlu0 0
        %1825 = vperm.xlu0 %1824, %v311
        %v1826 = vpop.permute.xlu0 %1825
        %1829 = vset.pattern.permute.xlu0 0
        %1830 = vperm.xlu0 %1829, %v312
        %v1831 = vpop.permute.xlu0 %1830
        %1834 = vset.pattern.permute.xlu0 0
        %1835 = vperm.xlu0 %1834, %v313
        %v1836 = vpop.permute.xlu0 %1835
        %1839 = vset.pattern.permute.xlu0 0
        %1840 = vperm.xlu0 %1839, %v314
        %v1841 = vpop.permute.xlu0 %1840
        %1844 = vset.pattern.permute.xlu0 0
        %1845 = vperm.xlu0 %1844, %v315
        %v1846 = vpop.permute.xlu0 %1845
        %1849 = vset.pattern.permute.xlu0 0
        %1850 = vperm.xlu0 %1849, %v316
        %v1851 = vpop.permute.xlu0 %1850
        %1854 = vset.pattern.permute.xlu0 0
        %1855 = vperm.xlu0 %1854, %v317
        %v1856 = vpop.permute.xlu0 %1855
        %1859 = vset.pattern.permute.xlu0 0
        %1860 = vperm.xlu0 %1859, %v318
        %v1861 = vpop.permute.xlu0 %1860
        %1864 = vset.pattern.permute.xlu0 0
        %1865 = vperm.xlu0 %1864, %v319
        %v1866 = vpop.permute.xlu0 %1865
        %1869 = vset.pattern.permute.xlu0 0
        %1870 = vperm.xlu0 %1869, %v320
        %v1871 = vpop.permute.xlu0 %1870
        %1874 = vset.pattern.permute.xlu0 0
        %1875 = vperm.xlu0 %1874, %v321
        %v1876 = vpop.permute.xlu0 %1875
        %1879 = vset.pattern.permute.xlu0 0
        %1880 = vperm.xlu0 %1879, %v322
        %v1881 = vpop.permute.xlu0 %1880
        %1884 = vset.pattern.permute.xlu0 0
        %1885 = vperm.xlu0 %1884, %v323
        %v1886 = vpop.permute.xlu0 %1885
        %1889 = vset.pattern.permute.xlu0 0
        %1890 = vperm.xlu0 %1889, %v324
        %v1891 = vpop.permute.xlu0 %1890
        %1894 = vset.pattern.permute.xlu0 0
        %1895 = vperm.xlu0 %1894, %v325
        %v1896 = vpop.permute.xlu0 %1895
        %1899 = vset.pattern.permute.xlu0 0
        %1900 = vperm.xlu0 %1899, %v326
        %v1901 = vpop.permute.xlu0 %1900
        %1904 = vset.pattern.permute.xlu0 0
        %1905 = vperm.xlu0 %1904, %v327
        %v1906 = vpop.permute.xlu0 %1905
        %1909 = vset.pattern.permute.xlu0 0
        %1910 = vperm.xlu0 %1909, %v328
        %v1911 = vpop.permute.xlu0 %1910
        %1914 = vset.pattern.permute.xlu0 0
        %1915 = vperm.xlu0 %1914, %v329
        %v1916 = vpop.permute.xlu0 %1915
        %1919 = vset.pattern.permute.xlu0 0
        %1920 = vperm.xlu0 %1919, %v330
        %v1921 = vpop.permute.xlu0 %1920
        %1924 = vset.pattern.permute.xlu0 0
        %1925 = vperm.xlu0 %1924, %v331
        %v1926 = vpop.permute.xlu0 %1925
        %1929 = vset.pattern.permute.xlu0 0
        %1930 = vperm.xlu0 %1929, %v332
        %v1931 = vpop.permute.xlu0 %1930
        %1934 = vset.pattern.permute.xlu0 0
        %1935 = vperm.xlu0 %1934, %v333
        %v1936 = vpop.permute.xlu0 %1935
        %1939 = vset.pattern.permute.xlu0 0
        %1940 = vperm.xlu0 %1939, %v334
        %v1941 = vpop.permute.xlu0 %1940
        %1944 = vset.pattern.permute.xlu0 0
        %1945 = vperm.xlu0 %1944, %v335
        %v1946 = vpop.permute.xlu0 %1945
        %1949 = vset.pattern.permute.xlu0 0
        %1950 = vperm.xlu0 %1949, %v336
        %v1951 = vpop.permute.xlu0 %1950
        %1954 = vset.pattern.permute.xlu0 0
        %1955 = vperm.xlu0 %1954, %v337
        %v1956 = vpop.permute.xlu0 %1955
        %1959 = vset.pattern.permute.xlu0 0
        %1960 = vperm.xlu0 %1959, %v338
        %v1961 = vpop.permute.xlu0 %1960
        %1964 = vset.pattern.permute.xlu0 0
        %1965 = vperm.xlu0 %1964, %v339
        %v1966 = vpop.permute.xlu0 %1965
        %1969 = vset.pattern.permute.xlu0 0
        %1970 = vperm.xlu0 %1969, %v340
        %v1971 = vpop.permute.xlu0 %1970
        %1974 = vset.pattern.permute.xlu0 0
        %1975 = vperm.xlu0 %1974, %v341
        %v1976 = vpop.permute.xlu0 %1975
        %1979 = vset.pattern.permute.xlu0 0
        %1980 = vperm.xlu0 %1979, %v342
        %v1981 = vpop.permute.xlu0 %1980
        %1984 = vset.pattern.permute.xlu0 0
        %1985 = vperm.xlu0 %1984, %v343
        %v1986 = vpop.permute.xlu0 %1985
        %1989 = vset.pattern.permute.xlu0 0
        %1990 = vperm.xlu0 %1989, %v344
        %v1991 = vpop.permute.xlu0 %1990
        %1994 = vset.pattern.permute.xlu0 0
        %1995 = vperm.xlu0 %1994, %v345
        %v1996 = vpop.permute.xlu0 %1995
        %1999 = vset.pattern.permute.xlu0 0
        %2000 = vperm.xlu0 %1999, %v346
        %v2001 = vpop.permute.xlu0 %2000
        %2004 = vset.pattern.permute.xlu0 0
        %2005 = vperm.xlu0 %2004, %v347
        %v2006 = vpop.permute.xlu0 %2005
        %2009 = vset.pattern.permute.xlu0 0
        %2010 = vperm.xlu0 %2009, %v348
        %v2011 = vpop.permute.xlu0 %2010
        %2014 = vset.pattern.permute.xlu0 0
        %2015 = vperm.xlu0 %2014, %v349
        %v2016 = vpop.permute.xlu0 %2015
        %2019 = vset.pattern.permute.xlu0 0
        %2020 = vperm.xlu0 %2019, %v350
        %v2021 = vpop.permute.xlu0 %2020
        %v2024 = vlaneseq
        %v2025 = vshrl.u32 %v2024, 7
        %v2026 = vsub.s32 0, %v2025
        %v2027 = vrot.slane %v1382, %v2026
        %v2029 = vmul.f32 %v1386, %v2027
        %v2030 = vmul.f32 %v1391, %v2027
        %v2031 = vmul.f32 %v1396, %v2027
        %v2032 = vmul.f32 %v1401, %v2027
        %v2033 = vmul.f32 %v1406, %v2027
        %v2034 = vmul.f32 %v1411, %v2027
        %v2035 = vmul.f32 %v1416, %v2027
        %v2036 = vmul.f32 %v1421, %v2027
        %v2037 = vmul.f32 %v1426, %v2027
        %v2038 = vmul.f32 %v1431, %v2027
        %v2039 = vmul.f32 %v1436, %v2027
        %v2040 = vmul.f32 %v1441, %v2027
        %v2041 = vmul.f32 %v1446, %v2027
        %v2042 = vmul.f32 %v1451, %v2027
        %v2043 = vmul.f32 %v1456, %v2027
        %v2044 = vmul.f32 %v1461, %v2027
        %v2045 = vmul.f32 %v1466, %v2027
        %v2046 = vmul.f32 %v1471, %v2027
        %v2047 = vmul.f32 %v1476, %v2027
        %v2048 = vmul.f32 %v1481, %v2027
        %v2049 = vmul.f32 %v1486, %v2027
        %v2050 = vmul.f32 %v1491, %v2027
        %v2051 = vmul.f32 %v1496, %v2027
        %v2052 = vmul.f32 %v1501, %v2027
        %v2053 = vmul.f32 %v1506, %v2027
        %v2054 = vmul.f32 %v1511, %v2027
        %v2055 = vmul.f32 %v1516, %v2027
        %v2056 = vmul.f32 %v1521, %v2027
        %v2057 = vmul.f32 %v1526, %v2027
        %v2058 = vmul.f32 %v1531, %v2027
        %v2059 = vmul.f32 %v1536, %v2027
        %v2060 = vmul.f32 %v1541, %v2027
        %v2061 = vmul.f32 %v1546, %v2027
        %v2062 = vmul.f32 %v1551, %v2027
        %v2063 = vmul.f32 %v1556, %v2027
        %v2064 = vmul.f32 %v1561, %v2027
        %v2065 = vmul.f32 %v1566, %v2027
        %v2066 = vmul.f32 %v1571, %v2027
        %v2067 = vmul.f32 %v1576, %v2027
        %v2068 = vmul.f32 %v1581, %v2027
        %v2069 = vmul.f32 %v1586, %v2027
        %v2070 = vmul.f32 %v1591, %v2027
        %v2071 = vmul.f32 %v1596, %v2027
        %v2072 = vmul.f32 %v1601, %v2027
        %v2073 = vmul.f32 %v1606, %v2027
        %v2074 = vmul.f32 %v1611, %v2027
        %v2075 = vmul.f32 %v1616, %v2027
        %v2076 = vmul.f32 %v1621, %v2027
        %v2077 = vmul.f32 %v1626, %v2027
        %v2078 = vmul.f32 %v1631, %v2027
        %v2079 = vmul.f32 %v1636, %v2027
        %v2080 = vmul.f32 %v1641, %v2027
        %v2081 = vmul.f32 %v1646, %v2027
        %v2082 = vmul.f32 %v1651, %v2027
        %v2083 = vmul.f32 %v1656, %v2027
        %v2084 = vmul.f32 %v1661, %v2027
        %v2085 = vmul.f32 %v1666, %v2027
        %v2086 = vmul.f32 %v1671, %v2027
        %v2087 = vmul.f32 %v1676, %v2027
        %v2088 = vmul.f32 %v1681, %v2027
        %v2089 = vmul.f32 %v1686, %v2027
        %v2090 = vmul.f32 %v1691, %v2027
        %v2091 = vmul.f32 %v1696, %v2027
        %v2092 = vmul.f32 %v1701, %v2027
        %v2093 = vmul.f32 %v1706, %v2027
        %v2094 = vmul.f32 %v1711, %v2027
        %v2095 = vmul.f32 %v1716, %v2027
        %v2096 = vmul.f32 %v1721, %v2027
        %v2097 = vmul.f32 %v1726, %v2027
        %v2098 = vmul.f32 %v1731, %v2027
        %v2099 = vmul.f32 %v1736, %v2027
        %v2100 = vmul.f32 %v1741, %v2027
        %v2101 = vmul.f32 %v1746, %v2027
        %v2102 = vmul.f32 %v1751, %v2027
        %v2103 = vmul.f32 %v1756, %v2027
        %v2104 = vmul.f32 %v1761, %v2027
        %v2105 = vmul.f32 %v1766, %v2027
        %v2106 = vmul.f32 %v1771, %v2027
        %v2107 = vmul.f32 %v1776, %v2027
        %v2108 = vmul.f32 %v1781, %v2027
        %v2109 = vmul.f32 %v1786, %v2027
        %v2110 = vmul.f32 %v1791, %v2027
        %v2111 = vmul.f32 %v1796, %v2027
        %v2112 = vmul.f32 %v1801, %v2027
        %v2113 = vmul.f32 %v1806, %v2027
        %v2114 = vmul.f32 %v1811, %v2027
        %v2115 = vmul.f32 %v1816, %v2027
        %v2116 = vmul.f32 %v1821, %v2027
        %v2117 = vmul.f32 %v1826, %v2027
        %v2118 = vmul.f32 %v1831, %v2027
        %v2119 = vmul.f32 %v1836, %v2027
        %v2120 = vmul.f32 %v1841, %v2027
        %v2121 = vmul.f32 %v1846, %v2027
        %v2122 = vmul.f32 %v1851, %v2027
        %v2123 = vmul.f32 %v1856, %v2027
        %v2124 = vmul.f32 %v1861, %v2027
        %v2125 = vmul.f32 %v1866, %v2027
        %v2126 = vmul.f32 %v1871, %v2027
        %v2127 = vmul.f32 %v1876, %v2027
        %v2128 = vmul.f32 %v1881, %v2027
        %v2129 = vmul.f32 %v1886, %v2027
        %v2130 = vmul.f32 %v1891, %v2027
        %v2131 = vmul.f32 %v1896, %v2027
        %v2132 = vmul.f32 %v1901, %v2027
        %v2133 = vmul.f32 %v1906, %v2027
        %v2134 = vmul.f32 %v1911, %v2027
        %v2135 = vmul.f32 %v1916, %v2027
        %v2136 = vmul.f32 %v1921, %v2027
        %v2137 = vmul.f32 %v1926, %v2027
        %v2138 = vmul.f32 %v1931, %v2027
        %v2139 = vmul.f32 %v1936, %v2027
        %v2140 = vmul.f32 %v1941, %v2027
        %v2141 = vmul.f32 %v1946, %v2027
        %v2142 = vmul.f32 %v1951, %v2027
        %v2143 = vmul.f32 %v1956, %v2027
        %v2144 = vmul.f32 %v1961, %v2027
        %v2145 = vmul.f32 %v1966, %v2027
        %v2146 = vmul.f32 %v1971, %v2027
        %v2147 = vmul.f32 %v1976, %v2027
        %v2148 = vmul.f32 %v1981, %v2027
        %v2149 = vmul.f32 %v1986, %v2027
        %v2150 = vmul.f32 %v1991, %v2027
        %v2151 = vmul.f32 %v1996, %v2027
        %v2152 = vmul.f32 %v2001, %v2027
        %v2153 = vmul.f32 %v2006, %v2027
        %v2154 = vmul.f32 %v2011, %v2027
        %v2155 = vmul.f32 %v2016, %v2027
        %v2156 = vmul.f32 %v2021, %v2027
        %v2157 = vadd.f32 %v1254, %v2029
        %v2158 = vadd.f32 %v1255, %v2030
        %v2159 = vadd.f32 %v1256, %v2031
        %v2160 = vadd.f32 %v1257, %v2032
        %v2161 = vadd.f32 %v1258, %v2033
        %v2162 = vadd.f32 %v1259, %v2034
        %v2163 = vadd.f32 %v1260, %v2035
        %v2164 = vadd.f32 %v1261, %v2036
        %v2165 = vadd.f32 %v1262, %v2037
        %v2166 = vadd.f32 %v1263, %v2038
        %v2167 = vadd.f32 %v1264, %v2039
        %v2168 = vadd.f32 %v1265, %v2040
        %v2169 = vadd.f32 %v1266, %v2041
        %v2170 = vadd.f32 %v1267, %v2042
        %v2171 = vadd.f32 %v1268, %v2043
        %v2172 = vadd.f32 %v1269, %v2044
        %v2173 = vadd.f32 %v1270, %v2045
        %v2174 = vadd.f32 %v1271, %v2046
        %v2175 = vadd.f32 %v1272, %v2047
        %v2176 = vadd.f32 %v1273, %v2048
        %v2177 = vadd.f32 %v1274, %v2049
        %v2178 = vadd.f32 %v1275, %v2050
        %v2179 = vadd.f32 %v1276, %v2051
        %v2180 = vadd.f32 %v1277, %v2052
        %v2181 = vadd.f32 %v1278, %v2053
        %v2182 = vadd.f32 %v1279, %v2054
        %v2183 = vadd.f32 %v1280, %v2055
        %v2184 = vadd.f32 %v1281, %v2056
        %v2185 = vadd.f32 %v1282, %v2057
        %v2186 = vadd.f32 %v1283, %v2058
        %v2187 = vadd.f32 %v1284, %v2059
        %v2188 = vadd.f32 %v1285, %v2060
        %v2189 = vadd.f32 %v1286, %v2061
        %v2190 = vadd.f32 %v1287, %v2062
        %v2191 = vadd.f32 %v1288, %v2063
        %v2192 = vadd.f32 %v1289, %v2064
        %v2193 = vadd.f32 %v1290, %v2065
        %v2194 = vadd.f32 %v1291, %v2066
        %v2195 = vadd.f32 %v1292, %v2067
        %v2196 = vadd.f32 %v1293, %v2068
        %v2197 = vadd.f32 %v1294, %v2069
        %v2198 = vadd.f32 %v1295, %v2070
        %v2199 = vadd.f32 %v1296, %v2071
        %v2200 = vadd.f32 %v1297, %v2072
        %v2201 = vadd.f32 %v1298, %v2073
        %v2202 = vadd.f32 %v1299, %v2074
        %v2203 = vadd.f32 %v1300, %v2075
        %v2204 = vadd.f32 %v1301, %v2076
        %v2205 = vadd.f32 %v1302, %v2077
        %v2206 = vadd.f32 %v1303, %v2078
        %v2207 = vadd.f32 %v1304, %v2079
        %v2208 = vadd.f32 %v1305, %v2080
        %v2209 = vadd.f32 %v1306, %v2081
        %v2210 = vadd.f32 %v1307, %v2082
        %v2211 = vadd.f32 %v1308, %v2083
        %v2212 = vadd.f32 %v1309, %v2084
        %v2213 = vadd.f32 %v1310, %v2085
        %v2214 = vadd.f32 %v1311, %v2086
        %v2215 = vadd.f32 %v1312, %v2087
        %v2216 = vadd.f32 %v1313, %v2088
        %v2217 = vadd.f32 %v1314, %v2089
        %v2218 = vadd.f32 %v1315, %v2090
        %v2219 = vadd.f32 %v1316, %v2091
        %v2220 = vadd.f32 %v1317, %v2092
        %v2221 = vadd.f32 %v1318, %v2093
        %v2222 = vadd.f32 %v1319, %v2094
        %v2223 = vadd.f32 %v1320, %v2095
        %v2224 = vadd.f32 %v1321, %v2096
        %v2225 = vadd.f32 %v1322, %v2097
        %v2226 = vadd.f32 %v1323, %v2098
        %v2227 = vadd.f32 %v1324, %v2099
        %v2228 = vadd.f32 %v1325, %v2100
        %v2229 = vadd.f32 %v1326, %v2101
        %v2230 = vadd.f32 %v1327, %v2102
        %v2231 = vadd.f32 %v1328, %v2103
        %v2232 = vadd.f32 %v1329, %v2104
        %v2233 = vadd.f32 %v1330, %v2105
        %v2234 = vadd.f32 %v1331, %v2106
        %v2235 = vadd.f32 %v1332, %v2107
        %v2236 = vadd.f32 %v1333, %v2108
        %v2237 = vadd.f32 %v1334, %v2109
        %v2238 = vadd.f32 %v1335, %v2110
        %v2239 = vadd.f32 %v1336, %v2111
        %v2240 = vadd.f32 %v1337, %v2112
        %v2241 = vadd.f32 %v1338, %v2113
        %v2242 = vadd.f32 %v1339, %v2114
        %v2243 = vadd.f32 %v1340, %v2115
        %v2244 = vadd.f32 %v1341, %v2116
        %v2245 = vadd.f32 %v1342, %v2117
        %v2246 = vadd.f32 %v1343, %v2118
        %v2247 = vadd.f32 %v1344, %v2119
        %v2248 = vadd.f32 %v1345, %v2120
        %v2249 = vadd.f32 %v1346, %v2121
        %v2250 = vadd.f32 %v1347, %v2122
        %v2251 = vadd.f32 %v1348, %v2123
        %v2252 = vadd.f32 %v1349, %v2124
        %v2253 = vadd.f32 %v1350, %v2125
        %v2254 = vadd.f32 %v1351, %v2126
        %v2255 = vadd.f32 %v1352, %v2127
        %v2256 = vadd.f32 %v1353, %v2128
        %v2257 = vadd.f32 %v1354, %v2129
        %v2258 = vadd.f32 %v1355, %v2130
        %v2259 = vadd.f32 %v1356, %v2131
        %v2260 = vadd.f32 %v1357, %v2132
        %v2261 = vadd.f32 %v1358, %v2133
        %v2262 = vadd.f32 %v1359, %v2134
        %v2263 = vadd.f32 %v1360, %v2135
        %v2264 = vadd.f32 %v1361, %v2136
        %v2265 = vadd.f32 %v1362, %v2137
        %v2266 = vadd.f32 %v1363, %v2138
        %v2267 = vadd.f32 %v1364, %v2139
        %v2268 = vadd.f32 %v1365, %v2140
        %v2269 = vadd.f32 %v1366, %v2141
        %v2270 = vadd.f32 %v1367, %v2142
        %v2271 = vadd.f32 %v1368, %v2143
        %v2272 = vadd.f32 %v1369, %v2144
        %v2273 = vadd.f32 %v1370, %v2145
        %v2274 = vadd.f32 %v1371, %v2146
        %v2275 = vadd.f32 %v1372, %v2147
        %v2276 = vadd.f32 %v1373, %v2148
        %v2277 = vadd.f32 %v1374, %v2149
        %v2278 = vadd.f32 %v1375, %v2150
        %v2279 = vadd.f32 %v1376, %v2151
        %v2280 = vadd.f32 %v1377, %v2152
        %v2281 = vadd.f32 %v1378, %v2153
        %v2282 = vadd.f32 %v1379, %v2154
        %v2283 = vadd.f32 %v1380, %v2155
        %v2284 = vadd.f32 %v1381, %v2156
        %v2285 = vld [vmem:[%s3] sm:$0x1]
        %v2287 = vlaneseq
        %v2288 = vshrl.u32 %v2287, 7
        %v2289 = vsub.s32 0, %v2288
        %v2290 = vrot.slane %v2285, %v2289
        %v2292 = vadd.f32 %v2157, %v2290
        %v2293 = vadd.f32 %v2158, %v2290
        %v2294 = vadd.f32 %v2159, %v2290
        %v2295 = vadd.f32 %v2160, %v2290
        %v2296 = vadd.f32 %v2161, %v2290
        %v2297 = vadd.f32 %v2162, %v2290
        %v2298 = vadd.f32 %v2163, %v2290
        %v2299 = vadd.f32 %v2164, %v2290
        %v2300 = vadd.f32 %v2165, %v2290
        %v2301 = vadd.f32 %v2166, %v2290
        %v2302 = vadd.f32 %v2167, %v2290
        %v2303 = vadd.f32 %v2168, %v2290
        %v2304 = vadd.f32 %v2169, %v2290
        %v2305 = vadd.f32 %v2170, %v2290
        %v2306 = vadd.f32 %v2171, %v2290
        %v2307 = vadd.f32 %v2172, %v2290
        %v2308 = vadd.f32 %v2173, %v2290
        %v2309 = vadd.f32 %v2174, %v2290
        %v2310 = vadd.f32 %v2175, %v2290
        %v2311 = vadd.f32 %v2176, %v2290
        %v2312 = vadd.f32 %v2177, %v2290
        %v2313 = vadd.f32 %v2178, %v2290
        %v2314 = vadd.f32 %v2179, %v2290
        %v2315 = vadd.f32 %v2180, %v2290
        %v2316 = vadd.f32 %v2181, %v2290
        %v2317 = vadd.f32 %v2182, %v2290
        %v2318 = vadd.f32 %v2183, %v2290
        %v2319 = vadd.f32 %v2184, %v2290
        %v2320 = vadd.f32 %v2185, %v2290
        %v2321 = vadd.f32 %v2186, %v2290
        %v2322 = vadd.f32 %v2187, %v2290
        %v2323 = vadd.f32 %v2188, %v2290
        %v2324 = vadd.f32 %v2189, %v2290
        %v2325 = vadd.f32 %v2190, %v2290
        %v2326 = vadd.f32 %v2191, %v2290
        %v2327 = vadd.f32 %v2192, %v2290
        %v2328 = vadd.f32 %v2193, %v2290
        %v2329 = vadd.f32 %v2194, %v2290
        %v2330 = vadd.f32 %v2195, %v2290
        %v2331 = vadd.f32 %v2196, %v2290
        %v2332 = vadd.f32 %v2197, %v2290
        %v2333 = vadd.f32 %v2198, %v2290
        %v2334 = vadd.f32 %v2199, %v2290
        %v2335 = vadd.f32 %v2200, %v2290
        %v2336 = vadd.f32 %v2201, %v2290
        %v2337 = vadd.f32 %v2202, %v2290
        %v2338 = vadd.f32 %v2203, %v2290
        %v2339 = vadd.f32 %v2204, %v2290
        %v2340 = vadd.f32 %v2205, %v2290
        %v2341 = vadd.f32 %v2206, %v2290
        %v2342 = vadd.f32 %v2207, %v2290
        %v2343 = vadd.f32 %v2208, %v2290
        %v2344 = vadd.f32 %v2209, %v2290
        %v2345 = vadd.f32 %v2210, %v2290
        %v2346 = vadd.f32 %v2211, %v2290
        %v2347 = vadd.f32 %v2212, %v2290
        %v2348 = vadd.f32 %v2213, %v2290
        %v2349 = vadd.f32 %v2214, %v2290
        %v2350 = vadd.f32 %v2215, %v2290
        %v2351 = vadd.f32 %v2216, %v2290
        %v2352 = vadd.f32 %v2217, %v2290
        %v2353 = vadd.f32 %v2218, %v2290
        %v2354 = vadd.f32 %v2219, %v2290
        %v2355 = vadd.f32 %v2220, %v2290
        %v2356 = vadd.f32 %v2221, %v2290
        %v2357 = vadd.f32 %v2222, %v2290
        %v2358 = vadd.f32 %v2223, %v2290
        %v2359 = vadd.f32 %v2224, %v2290
        %v2360 = vadd.f32 %v2225, %v2290
        %v2361 = vadd.f32 %v2226, %v2290
        %v2362 = vadd.f32 %v2227, %v2290
        %v2363 = vadd.f32 %v2228, %v2290
        %v2364 = vadd.f32 %v2229, %v2290
        %v2365 = vadd.f32 %v2230, %v2290
        %v2366 = vadd.f32 %v2231, %v2290
        %v2367 = vadd.f32 %v2232, %v2290
        %v2368 = vadd.f32 %v2233, %v2290
        %v2369 = vadd.f32 %v2234, %v2290
        %v2370 = vadd.f32 %v2235, %v2290
        %v2371 = vadd.f32 %v2236, %v2290
        %v2372 = vadd.f32 %v2237, %v2290
        %v2373 = vadd.f32 %v2238, %v2290
        %v2374 = vadd.f32 %v2239, %v2290
        %v2375 = vadd.f32 %v2240, %v2290
        %v2376 = vadd.f32 %v2241, %v2290
        %v2377 = vadd.f32 %v2242, %v2290
        %v2378 = vadd.f32 %v2243, %v2290
        %v2379 = vadd.f32 %v2244, %v2290
        %v2380 = vadd.f32 %v2245, %v2290
        %v2381 = vadd.f32 %v2246, %v2290
        %v2382 = vadd.f32 %v2247, %v2290
        %v2383 = vadd.f32 %v2248, %v2290
        %v2384 = vadd.f32 %v2249, %v2290
        %v2385 = vadd.f32 %v2250, %v2290
        %v2386 = vadd.f32 %v2251, %v2290
        %v2387 = vadd.f32 %v2252, %v2290
        %v2388 = vadd.f32 %v2253, %v2290
        %v2389 = vadd.f32 %v2254, %v2290
        %v2390 = vadd.f32 %v2255, %v2290
        %v2391 = vadd.f32 %v2256, %v2290
        %v2392 = vadd.f32 %v2257, %v2290
        %v2393 = vadd.f32 %v2258, %v2290
        %v2394 = vadd.f32 %v2259, %v2290
        %v2395 = vadd.f32 %v2260, %v2290
        %v2396 = vadd.f32 %v2261, %v2290
        %v2397 = vadd.f32 %v2262, %v2290
        %v2398 = vadd.f32 %v2263, %v2290
        %v2399 = vadd.f32 %v2264, %v2290
        %v2400 = vadd.f32 %v2265, %v2290
        %v2401 = vadd.f32 %v2266, %v2290
        %v2402 = vadd.f32 %v2267, %v2290
        %v2403 = vadd.f32 %v2268, %v2290
        %v2404 = vadd.f32 %v2269, %v2290
        %v2405 = vadd.f32 %v2270, %v2290
        %v2406 = vadd.f32 %v2271, %v2290
        %v2407 = vadd.f32 %v2272, %v2290
        %v2408 = vadd.f32 %v2273, %v2290
        %v2409 = vadd.f32 %v2274, %v2290
        %v2410 = vadd.f32 %v2275, %v2290
        %v2411 = vadd.f32 %v2276, %v2290
        %v2412 = vadd.f32 %v2277, %v2290
        %v2413 = vadd.f32 %v2278, %v2290
        %v2414 = vadd.f32 %v2279, %v2290
        %v2415 = vadd.f32 %v2280, %v2290
        %v2416 = vadd.f32 %v2281, %v2290
        %v2417 = vadd.f32 %v2282, %v2290
        %v2418 = vadd.f32 %v2283, %v2290
        %v2419 = vadd.f32 %v2284, %v2290
        %2420 = vst [vmem:[%s203] sm:$0xff] %v2292
        %2421 = vst [vmem:[%s203 + $0x8] sm:$0xff] %v2293
        %2422 = vst [vmem:[%s203 + $0x10] sm:$0xff] %v2294
        %2423 = vst [vmem:[%s203 + $0x18] sm:$0xff] %v2295
        %2424 = vst [vmem:[%s203 + $0x20] sm:$0xff] %v2296
        %2425 = vst [vmem:[%s203 + $0x28] sm:$0xff] %v2297
        %2426 = vst [vmem:[%s203 + $0x30] sm:$0xff] %v2298
        %2427 = vst [vmem:[%s203 + $0x38] sm:$0xff] %v2299
        %2428 = vst [vmem:[%s203 + $0x40] sm:$0xff] %v2300
        %2429 = vst [vmem:[%s203 + $0x48] sm:$0xff] %v2301
        %2430 = vst [vmem:[%s203 + $0x50] sm:$0xff] %v2302
        %2431 = vst [vmem:[%s203 + $0x58] sm:$0xff] %v2303
        %2432 = vst [vmem:[%s203 + $0x60] sm:$0xff] %v2304
        %2433 = vst [vmem:[%s203 + $0x68] sm:$0xff] %v2305
        %2434 = vst [vmem:[%s203 + $0x70] sm:$0xff] %v2306
        %2435 = vst [vmem:[%s203 + $0x78] sm:$0xff] %v2307
        %2436 = vst [vmem:[%s203 + $0x80] sm:$0xff] %v2308
        %2437 = vst [vmem:[%s203 + $0x88] sm:$0xff] %v2309
        %2438 = vst [vmem:[%s203 + $0x90] sm:$0xff] %v2310
        %2439 = vst [vmem:[%s203 + $0x98] sm:$0xff] %v2311
        %2440 = vst [vmem:[%s203 + $0xa0] sm:$0xff] %v2312
        %2441 = vst [vmem:[%s203 + $0xa8] sm:$0xff] %v2313
        %2442 = vst [vmem:[%s203 + $0xb0] sm:$0xff] %v2314
        %2443 = vst [vmem:[%s203 + $0xb8] sm:$0xff] %v2315
        %2444 = vst [vmem:[%s203 + $0xc0] sm:$0xff] %v2316
        %2445 = vst [vmem:[%s203 + $0xc8] sm:$0xff] %v2317
        %2446 = vst [vmem:[%s203 + $0xd0] sm:$0xff] %v2318
        %2447 = vst [vmem:[%s203 + $0xd8] sm:$0xff] %v2319
        %2448 = vst [vmem:[%s203 + $0xe0] sm:$0xff] %v2320
        %2449 = vst [vmem:[%s203 + $0xe8] sm:$0xff] %v2321
        %2450 = vst [vmem:[%s203 + $0xf0] sm:$0xff] %v2322
        %2451 = vst [vmem:[%s203 + $0xf8] sm:$0xff] %v2323
        %2452 = vst [vmem:[%s203 + $0x100] sm:$0xff] %v2324
        %2453 = vst [vmem:[%s203 + $0x108] sm:$0xff] %v2325
        %2454 = vst [vmem:[%s203 + $0x110] sm:$0xff] %v2326
        %2455 = vst [vmem:[%s203 + $0x118] sm:$0xff] %v2327
        %2456 = vst [vmem:[%s203 + $0x120] sm:$0xff] %v2328
        %2457 = vst [vmem:[%s203 + $0x128] sm:$0xff] %v2329
        %2458 = vst [vmem:[%s203 + $0x130] sm:$0xff] %v2330
        %2459 = vst [vmem:[%s203 + $0x138] sm:$0xff] %v2331
        %2460 = vst [vmem:[%s203 + $0x140] sm:$0xff] %v2332
        %2461 = vst [vmem:[%s203 + $0x148] sm:$0xff] %v2333
        %2462 = vst [vmem:[%s203 + $0x150] sm:$0xff] %v2334
        %2463 = vst [vmem:[%s203 + $0x158] sm:$0xff] %v2335
        %2464 = vst [vmem:[%s203 + $0x160] sm:$0xff] %v2336
        %2465 = vst [vmem:[%s203 + $0x168] sm:$0xff] %v2337
        %2466 = vst [vmem:[%s203 + $0x170] sm:$0xff] %v2338
        %2467 = vst [vmem:[%s203 + $0x178] sm:$0xff] %v2339
        %2468 = vst [vmem:[%s203 + $0x180] sm:$0xff] %v2340
        %2469 = vst [vmem:[%s203 + $0x188] sm:$0xff] %v2341
        %2470 = vst [vmem:[%s203 + $0x190] sm:$0xff] %v2342
        %2471 = vst [vmem:[%s203 + $0x198] sm:$0xff] %v2343
        %2472 = vst [vmem:[%s203 + $0x1a0] sm:$0xff] %v2344
        %2473 = vst [vmem:[%s203 + $0x1a8] sm:$0xff] %v2345
        %2474 = vst [vmem:[%s203 + $0x1b0] sm:$0xff] %v2346
        %2475 = vst [vmem:[%s203 + $0x1b8] sm:$0xff] %v2347
        %2476 = vst [vmem:[%s203 + $0x1c0] sm:$0xff] %v2348
        %2477 = vst [vmem:[%s203 + $0x1c8] sm:$0xff] %v2349
        %2478 = vst [vmem:[%s203 + $0x1d0] sm:$0xff] %v2350
        %2479 = vst [vmem:[%s203 + $0x1d8] sm:$0xff] %v2351
        %2480 = vst [vmem:[%s203 + $0x1e0] sm:$0xff] %v2352
        %2481 = vst [vmem:[%s203 + $0x1e8] sm:$0xff] %v2353
        %2482 = vst [vmem:[%s203 + $0x1f0] sm:$0xff] %v2354
        %2483 = vst [vmem:[%s203 + $0x1f8] sm:$0xff] %v2355
        %2484 = vst [vmem:[%s203 + $0x200] sm:$0xff] %v2356
        %2485 = vst [vmem:[%s203 + $0x208] sm:$0xff] %v2357
        %2486 = vst [vmem:[%s203 + $0x210] sm:$0xff] %v2358
        %2487 = vst [vmem:[%s203 + $0x218] sm:$0xff] %v2359
        %2488 = vst [vmem:[%s203 + $0x220] sm:$0xff] %v2360
        %2489 = vst [vmem:[%s203 + $0x228] sm:$0xff] %v2361
        %2490 = vst [vmem:[%s203 + $0x230] sm:$0xff] %v2362
        %2491 = vst [vmem:[%s203 + $0x238] sm:$0xff] %v2363
        %2492 = vst [vmem:[%s203 + $0x240] sm:$0xff] %v2364
        %2493 = vst [vmem:[%s203 + $0x248] sm:$0xff] %v2365
        %2494 = vst [vmem:[%s203 + $0x250] sm:$0xff] %v2366
        %2495 = vst [vmem:[%s203 + $0x258] sm:$0xff] %v2367
        %2496 = vst [vmem:[%s203 + $0x260] sm:$0xff] %v2368
        %2497 = vst [vmem:[%s203 + $0x268] sm:$0xff] %v2369
        %2498 = vst [vmem:[%s203 + $0x270] sm:$0xff] %v2370
        %2499 = vst [vmem:[%s203 + $0x278] sm:$0xff] %v2371
        %2500 = vst [vmem:[%s203 + $0x280] sm:$0xff] %v2372
        %2501 = vst [vmem:[%s203 + $0x288] sm:$0xff] %v2373
        %2502 = vst [vmem:[%s203 + $0x290] sm:$0xff] %v2374
        %2503 = vst [vmem:[%s203 + $0x298] sm:$0xff] %v2375
        %2504 = vst [vmem:[%s203 + $0x2a0] sm:$0xff] %v2376
        %2505 = vst [vmem:[%s203 + $0x2a8] sm:$0xff] %v2377
        %2506 = vst [vmem:[%s203 + $0x2b0] sm:$0xff] %v2378
        %2507 = vst [vmem:[%s203 + $0x2b8] sm:$0xff] %v2379
        %2508 = vst [vmem:[%s203 + $0x2c0] sm:$0xff] %v2380
        %2509 = vst [vmem:[%s203 + $0x2c8] sm:$0xff] %v2381
        %2510 = vst [vmem:[%s203 + $0x2d0] sm:$0xff] %v2382
        %2511 = vst [vmem:[%s203 + $0x2d8] sm:$0xff] %v2383
        %2512 = vst [vmem:[%s203 + $0x2e0] sm:$0xff] %v2384
        %2513 = vst [vmem:[%s203 + $0x2e8] sm:$0xff] %v2385
        %2514 = vst [vmem:[%s203 + $0x2f0] sm:$0xff] %v2386
        %2515 = vst [vmem:[%s203 + $0x2f8] sm:$0xff] %v2387
        %2516 = vst [vmem:[%s203 + $0x300] sm:$0xff] %v2388
        %2517 = vst [vmem:[%s203 + $0x308] sm:$0xff] %v2389
        %2518 = vst [vmem:[%s203 + $0x310] sm:$0xff] %v2390
        %2519 = vst [vmem:[%s203 + $0x318] sm:$0xff] %v2391
        %2520 = vst [vmem:[%s203 + $0x320] sm:$0xff] %v2392
        %2521 = vst [vmem:[%s203 + $0x328] sm:$0xff] %v2393
        %2522 = vst [vmem:[%s203 + $0x330] sm:$0xff] %v2394
        %2523 = vst [vmem:[%s203 + $0x338] sm:$0xff] %v2395
        %2524 = vst [vmem:[%s203 + $0x340] sm:$0xff] %v2396
        %2525 = vst [vmem:[%s203 + $0x348] sm:$0xff] %v2397
        %2526 = vst [vmem:[%s203 + $0x350] sm:$0xff] %v2398
        %2527 = vst [vmem:[%s203 + $0x358] sm:$0xff] %v2399
        %2528 = vst [vmem:[%s203 + $0x360] sm:$0xff] %v2400
        %2529 = vst [vmem:[%s203 + $0x368] sm:$0xff] %v2401
        %2530 = vst [vmem:[%s203 + $0x370] sm:$0xff] %v2402
        %2531 = vst [vmem:[%s203 + $0x378] sm:$0xff] %v2403
        %2532 = vst [vmem:[%s203 + $0x380] sm:$0xff] %v2404
        %2533 = vst [vmem:[%s203 + $0x388] sm:$0xff] %v2405
        %2534 = vst [vmem:[%s203 + $0x390] sm:$0xff] %v2406
        %2535 = vst [vmem:[%s203 + $0x398] sm:$0xff] %v2407
        %2536 = vst [vmem:[%s203 + $0x3a0] sm:$0xff] %v2408
        %2537 = vst [vmem:[%s203 + $0x3a8] sm:$0xff] %v2409
        %2538 = vst [vmem:[%s203 + $0x3b0] sm:$0xff] %v2410
        %2539 = vst [vmem:[%s203 + $0x3b8] sm:$0xff] %v2411
        %2540 = vst [vmem:[%s203 + $0x3c0] sm:$0xff] %v2412
        %2541 = vst [vmem:[%s203 + $0x3c8] sm:$0xff] %v2413
        %2542 = vst [vmem:[%s203 + $0x3d0] sm:$0xff] %v2414
        %2543 = vst [vmem:[%s203 + $0x3d8] sm:$0xff] %v2415
        %2544 = vst [vmem:[%s203 + $0x3e0] sm:$0xff] %v2416
        %2545 = vst [vmem:[%s203 + $0x3e8] sm:$0xff] %v2417
        %2546 = vst [vmem:[%s203 + $0x3f0] sm:$0xff] %v2418
        %2547 = vst [vmem:[%s203 + $0x3f8] sm:$0xff] %v2419
        %s2548 = sand.u32 %s115, 1
        %s2549 = scalar_lea.sflag [#allocation3], %s2548
        %s2550 = sand.u32 %s115, 1
        %s2551 = smul.addr %s2550, 1024
        %s2552 = scalar_lea.vmem [#allocation2], %s2551
        // Predicated region
        $region37: #{bernoulli_encoder_forward.1} parent=35 // pred_check
          %p2553 = pneg %p125
        $region38: #{bernoulli_encoder_forward.1} parent=35 // pred_check_branch
          %2555 = sbr.rel (%p2553) target = $region40
        $region39: #{bernoulli_encoder_forward.1} parent=35 // pred_region
          %s2556 = smul.u32 128, %s18
          %s2557 = ssub.s32 250, %s2556
          %p2558 = scmp.lt.s32.totalorder %s2557, 128
          %s2559 = scalar_select %p2558, %s2557, 128
          %s2560 = smul.u32 128, %s2559
          %s2562 = ssub.s32 16384, %s2560
          %2563 = vsyncadd %s2549, %s2562
          %p2564 = scmp.ne.s32.totalorder 0, %s2560
          %s2565 = smul.addr %s2556, 128
          %s2566 = scalar_lea.hbm %s4, %s2565
          %s2567 = smul.u32 8, %s2559
          %s2568 = sshll.u32 %s2552, 4
          %s2569 = int_to_ptr.vmem [resolvable:$true] %s2568
          %s2570 = sshll.u32 %s2567, 4
          %2574 = dma.vmem_to_hbm [thread:$0]  (%p2564), %s2569, %s2570, %s2566, %s2549, 128, 128, 8
        $region40: #{bernoulli_encoder_forward.1} parent=35 // pred_fallthru
          _
      $region36: #{bernoulli_encoder_forward.1} parent=5 // pred_fallthru
        _
      %p2575 = scmp.le.s32.totalorder 2, %s13
      // Predicated region
      $region41: #{bernoulli_encoder_forward.1} parent=5 // pred_check
        %p2576 = pneg %p2575
      $region42: #{bernoulli_encoder_forward.1} parent=5 // pred_check_branch
        %2578 = sbr.rel (%p2576) target = $region44
      $region43: #{bernoulli_encoder_forward.1} parent=5 // pred_region
        %s2579 = ssub.s32 %s13, 2
        // Predicated region
        $region45: #{bernoulli_encoder_forward.1} parent=43 // pred_check
          %p2580 = pneg %p131
        $region46: #{bernoulli_encoder_forward.1} parent=43 // pred_check_branch
          %2582 = sbr.rel (%p2580) target = $region48
        $region47: #{bernoulli_encoder_forward.1} parent=43 // pred_region
          %s2583 = sand.u32 %s116, 1
          %s2584 = scalar_lea.sflag [#allocation3], %s2583
          %s2585 = sand.u32 %s116, 1
          %s2586 = smul.addr %s2585, 1024
          %s2587 = scalar_lea.vmem [#allocation2], %s2586
          %2588 = dma.done %s2584, 16384
        $region48: #{bernoulli_encoder_forward.1} parent=43 // pred_fallthru
          _
      $region44: #{bernoulli_encoder_forward.1} parent=5 // pred_fallthru
        _
    $region6: #{bernoulli_encoder_forward.1} parent=1 // loop_footer
      %s17 = sadd.s32 1, %s13
    $region7: #{bernoulli_encoder_forward.1} parent=1 // loop_footer_branch
      %12 = sbr.rel target = $region3
    $region8: #{bernoulli_encoder_forward.1} parent=1 // loop_exit
      _
    %2589 = vsyncpa [#allocation3], 1
    %s2590 = scalar_lea.sflag [#allocation3], 1
    %2591 = vsyncpa %s2590, 1

</llo_original>
